<compile_context>
chip_gen: v5e
topology: v5e:2x2
jax: 0.10.0
libtpu: 0.0.40
codegen_flags: <defaults>
</compile_context>

<pallas_src>
import functools

import jax
import jax.numpy as jnp
from jax.experimental import pallas as pl
from jax.experimental.pallas import tpu as pltpu


def _gcn_kernel(x_ref, adj_ref, d_ref, w_ref, b_ref, o_ref, hp_ref, *, negative_slope):
    """One grid step == (one batch element) x (one lane chunk of C_out*T).

    x_ref  : [C_in, N, T]       VMEM (batch dim squeezed; same block across chunk steps)
    adj_ref: [N, N]             VMEM, raw un-normalized adjacency (bf16, constant block)
    d_ref  : [N, 1]             VMEM, D^{-1/2} row scaling (precomputed in the wrapper)
    w_ref  : [C_in, C_out]      SMEM scalars
    b_ref  : [C_out]            SMEM scalars
    o_ref  : [N, chunk_cols]    VMEM output block of the [B, N, C_out*T] slab (lane-dense)
    hp_ref : [N, chunk_cols]    VMEM scratch: hp = D^{-1/2} (X W + b) for this chunk
    """
    c_in, _, t = x_ref.shape
    chunk_cols = hp_ref.shape[1]
    chunk_o = chunk_cols // t
    j = pl.program_id(1)

    d = d_ref[...]                                       # [N, 1] f32

    # ---- channel mix, fused with d and bias: hp = d * (X W + b) --------------------
    # K = C_in is tiny -> VPU scalar-vector FMAs, not a skinny matmul.
    for oo in range(chunk_o):
        o_idx = j * chunk_o + oo                          # dynamic output-channel index
        acc = w_ref[0, o_idx] * x_ref[0]                  # [N, T]
        for c in range(1, c_in):
            acc = acc + w_ref[c, o_idx] * x_ref[c]
        # TODO(synk): when T % 128 != 0 this is a masked lane-offset store; pad T to a
        #             multiple of 128 (or switch to a 3-D scratch) if T grows.
        hp_ref[:, oo * t:(oo + 1) * t] = (d * (acc + b_ref[o_idx])).astype(hp_ref.dtype)

    # ---- message passing: Ahat @ H == d * (A @ hp + hp), hp = d*H -------------------
    hp = hp_ref[...]                                      # [N, chunk_cols] (MXU dtype)
    y = jnp.dot(adj_ref[...], hp, preferred_element_type=jnp.float32)   # bf16 MXU matmul
    y = d * (y + hp.astype(jnp.float32))
    o_ref[...] = jnp.where(y >= 0, y, negative_slope * y)  # F.leaky_relu, lane-dense store


def _pick_chunk_o(c_out, t, max_lanes=512):
    """Largest divisor k of c_out with k*t a multiple of 128 lanes and <= max_lanes.
    Falls back to the full c_out (block == full lane extent, always a legal BlockSpec)."""
    best = 0
    for k in range(1, c_out + 1):
        if c_out % k == 0 and (k * t) % 128 == 0 and k * t <= max_lanes:
            best = k
    return best if best else c_out


def gcn_layer_forward(x, adj, weight, bias, *, negative_slope=0.01,
                      mxu_dtype=jnp.bfloat16):
    """x: [B, C_in, N, T], adj: [N, N], weight: [C_in, C_out], bias: [C_out]
    returns: [B, C_out, N, T] (float32).

    mxu_dtype=bf16 is exact for 0/1 adjacencies (normalization is factored out of A);
    pass mxu_dtype=jnp.float32 for weighted adjacencies if bf16 rounding matters."""
    b, c_in, n, t = x.shape
    c_out = weight.shape[1]

    x = x.astype(jnp.float32)
    adj_f32 = adj.astype(jnp.float32)
    weight = weight.astype(jnp.float32)
    bias = bias.astype(jnp.float32)

    # D^{-1/2} of (A + I), computed once (adjacency is identical for every grid step).
    deg = jnp.sum(adj_f32, axis=1, keepdims=True) + 1.0
    d = jax.lax.rsqrt(deg)
    d = jnp.where(jnp.isfinite(d), d, 0.0)                 # inf / nan degrees -> 0

    adj_mxu = adj_f32.astype(mxu_dtype)

    chunk_o = _pick_chunk_o(c_out, t)
    n_chunks = c_out // chunk_o
    chunk_cols = chunk_o * t

    # Per-step VMEM estimate (x/out double-buffered by the pipeline) + headroom, capped
    # below the per-core capacity (64 MiB on v7x, 128 MiB on v5e/v6e).
    isz = jnp.dtype(mxu_dtype).itemsize
    est = (2 * c_in * n * t * 4 + 2 * n * chunk_cols * 4
           + 2 * n * n * isz + 2 * n * 4 + n * chunk_cols * isz)
    try:
        vmem_cap = int(pltpu.get_tpu_info().vmem_capacity_bytes)
    except Exception:
        vmem_cap = 64 * 1024 * 1024                        # conservative (v7x per-TC)
    vmem_limit = int(min(max(4 * est, 32 * 1024 * 1024), vmem_cap - 4 * 1024 * 1024))

    kernel = functools.partial(_gcn_kernel, negative_slope=negative_slope)
    out = pl.pallas_call(
        kernel,
        out_shape=jax.ShapeDtypeStruct((b, n, c_out * t), jnp.float32),
        grid=(b, n_chunks),
        in_specs=[
            # whole [C_in, N, T] slab of one batch element; same block across chunk steps
            pl.BlockSpec((None, c_in, n, t), lambda bi, j: (bi, 0, 0, 0)),
            # raw adjacency (bf16): constant block -> stays resident across the grid
            # (pipeline_mode=pl.Buffered(1) would halve its footprint if VMEM gets tight)
            pl.BlockSpec((n, n), lambda bi, j: (0, 0)),
            # D^{-1/2} row scaling, tiny [N, 1] block, constant
            pl.BlockSpec((n, 1), lambda bi, j: (0, 0)),
            # small parameters as SMEM scalars
            pl.BlockSpec(memory_space=pltpu.MemorySpace.SMEM),
            pl.BlockSpec(memory_space=pltpu.MemorySpace.SMEM),
        ],
        # lane-dense output slab [B, N, C_out*T]; chunk_cols is a multiple of 128 (or the
        # full lane extent), so every output store is an unmasked full-vreg store.
        out_specs=pl.BlockSpec((None, n, chunk_cols), lambda bi, j: (bi, 0, j)),
        scratch_shapes=[pltpu.VMEM((n, chunk_cols), mxu_dtype)],
        compiler_params=pltpu.CompilerParams(
            dimension_semantics=("parallel", "parallel"),   # batch x lane-chunk steps
            vmem_limit_bytes=vmem_limit,
        ),
    )(x, adj_mxu, d, weight, bias)

    # [B, N, C_out*T] -> [B, C_out, N, T] (cheap XLA reshape/transpose, per review).
    return out.reshape(b, n, c_out, t).transpose(0, 2, 1, 3)


# ---------------------------------------------------------------------------
# Pure-JAX reference (mirrors the PyTorch module) for a sanity check.
# ---------------------------------------------------------------------------
def _reference(x, adj, weight, bias, negative_slope=0.01):
    n = adj.shape[0]
    a = adj + jnp.eye(n, dtype=adj.dtype)
    d = jnp.sum(a, axis=1) ** -0.5
    d = jnp.where(jnp.isfinite(d), d, 0.0)
    a_hat = d[:, None] * a * d[None, :]
    h = jnp.einsum("abcd,bx->axcd", x, weight) + bias[None, :, None, None]
    y = jnp.einsum("nm,aomt->aont", a_hat, h)
    return jnp.where(y >= 0, y, negative_slope * y)


if __name__ == "__main__":
    B, C_IN, C_OUT, N, T = 2, 4, 8, 16, 16

    key = jax.random.PRNGKey(0)
    kx, kadj, kw, kb = jax.random.split(key, 4)

    # Inputs
    x = jax.random.normal(kx, (B, C_IN, N, T), dtype=jnp.float32)
    a_rand = (jax.random.uniform(kadj, (N, N)) > 0.7).astype(jnp.float32)
    adj = jnp.maximum(a_rand, a_rand.T) * (1.0 - jnp.eye(N, dtype=jnp.float32))

    # Parameters: xavier_uniform_-style weight; nonzero bias to exercise the bias path
    # (the module initializes bias to zeros, but forward semantics are bias-generic).
    bound = (6.0 / (C_IN + C_OUT)) ** 0.5
    weight = jax.random.uniform(kw, (C_IN, C_OUT), jnp.float32, -bound, bound)
    bias = 0.1 * jax.random.normal(kb, (C_OUT,), dtype=jnp.float32)

    out = jax.block_until_ready(gcn_layer_forward(x, adj, weight, bias))
    assert out.shape == (B, C_OUT, N, T), out.shape

    ref = _reference(x, adj, weight, bias)
    assert jnp.allclose(out, ref, rtol=1e-2, atol=1e-2), (
        float(jnp.max(jnp.abs(out - ref))))

    print("KERNEL_OK")
</pallas_src>

<mosaic_0001>
module attributes {stable_mosaic.version = 11 : i64} {
  func.func @_gcn_kernel(%arg0: i32, %arg1: i32, %arg2: memref<1x4x16x16xf32, #tpu.memory_space<vmem>>, %arg3: memref<16x16xbf16, #tpu.memory_space<vmem>>, %arg4: memref<16x1xf32, #tpu.memory_space<vmem>>, %arg5: memref<4x8xf32, #tpu.memory_space<smem>>, %arg6: memref<8xf32, #tpu.memory_space<smem>>, %arg7: memref<1x16x128xf32, #tpu.memory_space<vmem>>, %arg8: memref<16x128xbf16, #tpu.memory_space<vmem>>) attributes {dimension_semantics = [#tpu.dimension_semantics<parallel>, #tpu.dimension_semantics<parallel>], iteration_bounds = array<i64: 2, 1>, scalar_prefetch = 0 : i64, scratch_operands = 1 : i64, tpu.core_type = #tpu.core_type<tc>, window_params = [{transform_indices = @transform_0, window_bounds = array<i64: 1, 4, 16, 16>}, {pipeline_mode = #tpu.pipeline_mode<synchronous>, transform_indices = @transform_1, window_bounds = array<i64: 16, 16>}, {pipeline_mode = #tpu.pipeline_mode<synchronous>, transform_indices = @transform_2, window_bounds = array<i64: 16, 1>}, {transform_indices = @transform_3, window_bounds = array<i64: 4, 8>}, {transform_indices = @transform_4, window_bounds = array<i64: 8>}, {transform_indices = @transform_5, window_bounds = array<i64: 1, 16, 128>}]} {
    %c0 = arith.constant 0 : index
    %c0_0 = arith.constant 0 : index
    %0 = vector.load %arg4[%c0, %c0_0] : memref<16x1xf32, #tpu.memory_space<vmem>>, vector<16x1xf32>
    %c8_i32 = arith.constant 8 : i32
    %1 = arith.muli %arg1, %c8_i32 : i32
    %c0_i32 = arith.constant 0 : i32
    %2 = arith.addi %1, %c0_i32 : i32
    %c0_1 = arith.constant 0 : index
    %3 = arith.index_cast %2 : i32 to index
    %4 = memref.load %arg5[%c0_1, %3] : memref<4x8xf32, #tpu.memory_space<smem>>
    %c0_2 = arith.constant 0 : index
    %c0_3 = arith.constant 0 : index
    %c0_4 = arith.constant 0 : index
    %c0_5 = arith.constant 0 : index
    %5 = vector.load %arg2[%c0_2, %c0_3, %c0_4, %c0_5] : memref<1x4x16x16xf32, #tpu.memory_space<vmem>>, vector<1x1x16x16xf32>
    %6 = vector.shape_cast %5 : vector<1x1x16x16xf32> to vector<16x16xf32>
    %7 = vector.broadcast %4 : f32 to vector<16x16xf32>
    %8 = arith.mulf %7, %6 : vector<16x16xf32>
    %c1 = arith.constant 1 : index
    %9 = arith.index_cast %2 : i32 to index
    %10 = memref.load %arg5[%c1, %9] : memref<4x8xf32, #tpu.memory_space<smem>>
    %c0_6 = arith.constant 0 : index
    %c1_7 = arith.constant 1 : index
    %c0_8 = arith.constant 0 : index
    %c0_9 = arith.constant 0 : index
    %11 = vector.load %arg2[%c0_6, %c1_7, %c0_8, %c0_9] : memref<1x4x16x16xf32, #tpu.memory_space<vmem>>, vector<1x1x16x16xf32>
    %12 = vector.shape_cast %11 : vector<1x1x16x16xf32> to vector<16x16xf32>
    %13 = vector.broadcast %10 : f32 to vector<16x16xf32>
    %14 = arith.mulf %13, %12 : vector<16x16xf32>
    %15 = arith.addf %8, %14 : vector<16x16xf32>
    %c2 = arith.constant 2 : index
    %16 = arith.index_cast %2 : i32 to index
    %17 = memref.load %arg5[%c2, %16] : memref<4x8xf32, #tpu.memory_space<smem>>
    %c0_10 = arith.constant 0 : index
    %c2_11 = arith.constant 2 : index
    %c0_12 = arith.constant 0 : index
    %c0_13 = arith.constant 0 : index
    %18 = vector.load %arg2[%c0_10, %c2_11, %c0_12, %c0_13] : memref<1x4x16x16xf32, #tpu.memory_space<vmem>>, vector<1x1x16x16xf32>
    %19 = vector.shape_cast %18 : vector<1x1x16x16xf32> to vector<16x16xf32>
    %20 = vector.broadcast %17 : f32 to vector<16x16xf32>
    %21 = arith.mulf %20, %19 : vector<16x16xf32>
    %22 = arith.addf %15, %21 : vector<16x16xf32>
    %c3 = arith.constant 3 : index
    %23 = arith.index_cast %2 : i32 to index
    %24 = memref.load %arg5[%c3, %23] : memref<4x8xf32, #tpu.memory_space<smem>>
    %c0_14 = arith.constant 0 : index
    %c3_15 = arith.constant 3 : index
    %c0_16 = arith.constant 0 : index
    %c0_17 = arith.constant 0 : index
    %25 = vector.load %arg2[%c0_14, %c3_15, %c0_16, %c0_17] : memref<1x4x16x16xf32, #tpu.memory_space<vmem>>, vector<1x1x16x16xf32>
    %26 = vector.shape_cast %25 : vector<1x1x16x16xf32> to vector<16x16xf32>
    %27 = vector.broadcast %24 : f32 to vector<16x16xf32>
    %28 = arith.mulf %27, %26 : vector<16x16xf32>
    %29 = arith.addf %22, %28 : vector<16x16xf32>
    %30 = arith.index_cast %2 : i32 to index
    %31 = memref.load %arg6[%30] : memref<8xf32, #tpu.memory_space<smem>>
    %32 = vector.broadcast %31 : f32 to vector<16x16xf32>
    %33 = arith.addf %29, %32 : vector<16x16xf32>
    %34 = vector.broadcast %0 : vector<16x1xf32> to vector<16x16xf32>
    %35 = arith.mulf %34, %33 : vector<16x16xf32>
    %36 = arith.truncf %35 : vector<16x16xf32> to vector<16x16xbf16>
    %c0_18 = arith.constant 0 : index
    %c0_19 = arith.constant 0 : index
    %37 = vector.load %arg8[%c0_18, %c0_19] : memref<16x128xbf16, #tpu.memory_space<vmem>>, vector<16x16xbf16>
    tpu.vector_store %arg8[%c0_18, %c0_19], %36 {strides = array<i32>} : memref<16x128xbf16, #tpu.memory_space<vmem>>, vector<16x16xbf16>,
    %c8_i32_20 = arith.constant 8 : i32
    %38 = arith.muli %arg1, %c8_i32_20 : i32
    %c1_i32 = arith.constant 1 : i32
    %39 = arith.addi %38, %c1_i32 : i32
    %c0_21 = arith.constant 0 : index
    %40 = arith.index_cast %39 : i32 to index
    %41 = memref.load %arg5[%c0_21, %40] : memref<4x8xf32, #tpu.memory_space<smem>>
    %c0_22 = arith.constant 0 : index
    %c0_23 = arith.constant 0 : index
    %c0_24 = arith.constant 0 : index
    %c0_25 = arith.constant 0 : index
    %42 = vector.load %arg2[%c0_22, %c0_23, %c0_24, %c0_25] : memref<1x4x16x16xf32, #tpu.memory_space<vmem>>, vector<1x1x16x16xf32>
    %43 = vector.shape_cast %42 : vector<1x1x16x16xf32> to vector<16x16xf32>
    %44 = vector.broadcast %41 : f32 to vector<16x16xf32>
    %45 = arith.mulf %44, %43 : vector<16x16xf32>
    %c1_26 = arith.constant 1 : index
    %46 = arith.index_cast %39 : i32 to index
    %47 = memref.load %arg5[%c1_26, %46] : memref<4x8xf32, #tpu.memory_space<smem>>
    %c0_27 = arith.constant 0 : index
    %c1_28 = arith.constant 1 : index
    %c0_29 = arith.constant 0 : index
    %c0_30 = arith.constant 0 : index
    %48 = vector.load %arg2[%c0_27, %c1_28, %c0_29, %c0_30] : memref<1x4x16x16xf32, #tpu.memory_space<vmem>>, vector<1x1x16x16xf32>
    %49 = vector.shape_cast %48 : vector<1x1x16x16xf32> to vector<16x16xf32>
    %50 = vector.broadcast %47 : f32 to vector<16x16xf32>
    %51 = arith.mulf %50, %49 : vector<16x16xf32>
    %52 = arith.addf %45, %51 : vector<16x16xf32>
    %c2_31 = arith.constant 2 : index
    %53 = arith.index_cast %39 : i32 to index
    %54 = memref.load %arg5[%c2_31, %53] : memref<4x8xf32, #tpu.memory_space<smem>>
    %c0_32 = arith.constant 0 : index
    %c2_33 = arith.constant 2 : index
    %c0_34 = arith.constant 0 : index
    %c0_35 = arith.constant 0 : index
    %55 = vector.load %arg2[%c0_32, %c2_33, %c0_34, %c0_35] : memref<1x4x16x16xf32, #tpu.memory_space<vmem>>, vector<1x1x16x16xf32>
    %56 = vector.shape_cast %55 : vector<1x1x16x16xf32> to vector<16x16xf32>
    %57 = vector.broadcast %54 : f32 to vector<16x16xf32>
    %58 = arith.mulf %57, %56 : vector<16x16xf32>
    %59 = arith.addf %52, %58 : vector<16x16xf32>
    %c3_36 = arith.constant 3 : index
    %60 = arith.index_cast %39 : i32 to index
    %61 = memref.load %arg5[%c3_36, %60] : memref<4x8xf32, #tpu.memory_space<smem>>
    %c0_37 = arith.constant 0 : index
    %c3_38 = arith.constant 3 : index
    %c0_39 = arith.constant 0 : index
    %c0_40 = arith.constant 0 : index
    %62 = vector.load %arg2[%c0_37, %c3_38, %c0_39, %c0_40] : memref<1x4x16x16xf32, #tpu.memory_space<vmem>>, vector<1x1x16x16xf32>
    %63 = vector.shape_cast %62 : vector<1x1x16x16xf32> to vector<16x16xf32>
    %64 = vector.broadcast %61 : f32 to vector<16x16xf32>
    %65 = arith.mulf %64, %63 : vector<16x16xf32>
    %66 = arith.addf %59, %65 : vector<16x16xf32>
    %67 = arith.index_cast %39 : i32 to index
    %68 = memref.load %arg6[%67] : memref<8xf32, #tpu.memory_space<smem>>
    %69 = vector.broadcast %68 : f32 to vector<16x16xf32>
    %70 = arith.addf %66, %69 : vector<16x16xf32>
    %71 = vector.broadcast %0 : vector<16x1xf32> to vector<16x16xf32>
    %72 = arith.mulf %71, %70 : vector<16x16xf32>
    %73 = arith.truncf %72 : vector<16x16xf32> to vector<16x16xbf16>
    %c0_41 = arith.constant 0 : index
    %c16 = arith.constant 16 : index
    %74 = vector.load %arg8[%c0_41, %c16] : memref<16x128xbf16, #tpu.memory_space<vmem>>, vector<16x16xbf16>
    tpu.vector_store %arg8[%c0_41, %c16], %73 {strides = array<i32>} : memref<16x128xbf16, #tpu.memory_space<vmem>>, vector<16x16xbf16>,
    %c8_i32_42 = arith.constant 8 : i32
    %75 = arith.muli %arg1, %c8_i32_42 : i32
    %c2_i32 = arith.constant 2 : i32
    %76 = arith.addi %75, %c2_i32 : i32
    %c0_43 = arith.constant 0 : index
    %77 = arith.index_cast %76 : i32 to index
    %78 = memref.load %arg5[%c0_43, %77] : memref<4x8xf32, #tpu.memory_space<smem>>
    %c0_44 = arith.constant 0 : index
    %c0_45 = arith.constant 0 : index
    %c0_46 = arith.constant 0 : index
    %c0_47 = arith.constant 0 : index
    %79 = vector.load %arg2[%c0_44, %c0_45, %c0_46, %c0_47] : memref<1x4x16x16xf32, #tpu.memory_space<vmem>>, vector<1x1x16x16xf32>
    %80 = vector.shape_cast %79 : vector<1x1x16x16xf32> to vector<16x16xf32>
    %81 = vector.broadcast %78 : f32 to vector<16x16xf32>
    %82 = arith.mulf %81, %80 : vector<16x16xf32>
    %c1_48 = arith.constant 1 : index
    %83 = arith.index_cast %76 : i32 to index
    %84 = memref.load %arg5[%c1_48, %83] : memref<4x8xf32, #tpu.memory_space<smem>>
    %c0_49 = arith.constant 0 : index
    %c1_50 = arith.constant 1 : index
    %c0_51 = arith.constant 0 : index
    %c0_52 = arith.constant 0 : index
    %85 = vector.load %arg2[%c0_49, %c1_50, %c0_51, %c0_52] : memref<1x4x16x16xf32, #tpu.memory_space<vmem>>, vector<1x1x16x16xf32>
    %86 = vector.shape_cast %85 : vector<1x1x16x16xf32> to vector<16x16xf32>
    %87 = vector.broadcast %84 : f32 to vector<16x16xf32>
    %88 = arith.mulf %87, %86 : vector<16x16xf32>
    %89 = arith.addf %82, %88 : vector<16x16xf32>
    %c2_53 = arith.constant 2 : index
    %90 = arith.index_cast %76 : i32 to index
    %91 = memref.load %arg5[%c2_53, %90] : memref<4x8xf32, #tpu.memory_space<smem>>
    %c0_54 = arith.constant 0 : index
    %c2_55 = arith.constant 2 : index
    %c0_56 = arith.constant 0 : index
    %c0_57 = arith.constant 0 : index
    %92 = vector.load %arg2[%c0_54, %c2_55, %c0_56, %c0_57] : memref<1x4x16x16xf32, #tpu.memory_space<vmem>>, vector<1x1x16x16xf32>
    %93 = vector.shape_cast %92 : vector<1x1x16x16xf32> to vector<16x16xf32>
    %94 = vector.broadcast %91 : f32 to vector<16x16xf32>
    %95 = arith.mulf %94, %93 : vector<16x16xf32>
    %96 = arith.addf %89, %95 : vector<16x16xf32>
    %c3_58 = arith.constant 3 : index
    %97 = arith.index_cast %76 : i32 to index
    %98 = memref.load %arg5[%c3_58, %97] : memref<4x8xf32, #tpu.memory_space<smem>>
    %c0_59 = arith.constant 0 : index
    %c3_60 = arith.constant 3 : index
    %c0_61 = arith.constant 0 : index
    %c0_62 = arith.constant 0 : index
    %99 = vector.load %arg2[%c0_59, %c3_60, %c0_61, %c0_62] : memref<1x4x16x16xf32, #tpu.memory_space<vmem>>, vector<1x1x16x16xf32>
    %100 = vector.shape_cast %99 : vector<1x1x16x16xf32> to vector<16x16xf32>
    %101 = vector.broadcast %98 : f32 to vector<16x16xf32>
    %102 = arith.mulf %101, %100 : vector<16x16xf32>
    %103 = arith.addf %96, %102 : vector<16x16xf32>
    %104 = arith.index_cast %76 : i32 to index
    %105 = memref.load %arg6[%104] : memref<8xf32, #tpu.memory_space<smem>>
    %106 = vector.broadcast %105 : f32 to vector<16x16xf32>
    %107 = arith.addf %103, %106 : vector<16x16xf32>
    %108 = vector.broadcast %0 : vector<16x1xf32> to vector<16x16xf32>
    %109 = arith.mulf %108, %107 : vector<16x16xf32>
    %110 = arith.truncf %109 : vector<16x16xf32> to vector<16x16xbf16>
    %c0_63 = arith.constant 0 : index
    %c32 = arith.constant 32 : index
    %111 = vector.load %arg8[%c0_63, %c32] : memref<16x128xbf16, #tpu.memory_space<vmem>>, vector<16x16xbf16>
    tpu.vector_store %arg8[%c0_63, %c32], %110 {strides = array<i32>} : memref<16x128xbf16, #tpu.memory_space<vmem>>, vector<16x16xbf16>,
    %c8_i32_64 = arith.constant 8 : i32
    %112 = arith.muli %arg1, %c8_i32_64 : i32
    %c3_i32 = arith.constant 3 : i32
    %113 = arith.addi %112, %c3_i32 : i32
    %c0_65 = arith.constant 0 : index
    %114 = arith.index_cast %113 : i32 to index
    %115 = memref.load %arg5[%c0_65, %114] : memref<4x8xf32, #tpu.memory_space<smem>>
    %c0_66 = arith.constant 0 : index
    %c0_67 = arith.constant 0 : index
    %c0_68 = arith.constant 0 : index
    %c0_69 = arith.constant 0 : index
    %116 = vector.load %arg2[%c0_66, %c0_67, %c0_68, %c0_69] : memref<1x4x16x16xf32, #tpu.memory_space<vmem>>, vector<1x1x16x16xf32>
    %117 = vector.shape_cast %116 : vector<1x1x16x16xf32> to vector<16x16xf32>
    %118 = vector.broadcast %115 : f32 to vector<16x16xf32>
    %119 = arith.mulf %118, %117 : vector<16x16xf32>
    %c1_70 = arith.constant 1 : index
    %120 = arith.index_cast %113 : i32 to index
    %121 = memref.load %arg5[%c1_70, %120] : memref<4x8xf32, #tpu.memory_space<smem>>
    %c0_71 = arith.constant 0 : index
    %c1_72 = arith.constant 1 : index
    %c0_73 = arith.constant 0 : index
    %c0_74 = arith.constant 0 : index
    %122 = vector.load %arg2[%c0_71, %c1_72, %c0_73, %c0_74] : memref<1x4x16x16xf32, #tpu.memory_space<vmem>>, vector<1x1x16x16xf32>
    %123 = vector.shape_cast %122 : vector<1x1x16x16xf32> to vector<16x16xf32>
    %124 = vector.broadcast %121 : f32 to vector<16x16xf32>
    %125 = arith.mulf %124, %123 : vector<16x16xf32>
    %126 = arith.addf %119, %125 : vector<16x16xf32>
    %c2_75 = arith.constant 2 : index
    %127 = arith.index_cast %113 : i32 to index
    %128 = memref.load %arg5[%c2_75, %127] : memref<4x8xf32, #tpu.memory_space<smem>>
    %c0_76 = arith.constant 0 : index
    %c2_77 = arith.constant 2 : index
    %c0_78 = arith.constant 0 : index
    %c0_79 = arith.constant 0 : index
    %129 = vector.load %arg2[%c0_76, %c2_77, %c0_78, %c0_79] : memref<1x4x16x16xf32, #tpu.memory_space<vmem>>, vector<1x1x16x16xf32>
    %130 = vector.shape_cast %129 : vector<1x1x16x16xf32> to vector<16x16xf32>
    %131 = vector.broadcast %128 : f32 to vector<16x16xf32>
    %132 = arith.mulf %131, %130 : vector<16x16xf32>
    %133 = arith.addf %126, %132 : vector<16x16xf32>
    %c3_80 = arith.constant 3 : index
    %134 = arith.index_cast %113 : i32 to index
    %135 = memref.load %arg5[%c3_80, %134] : memref<4x8xf32, #tpu.memory_space<smem>>
    %c0_81 = arith.constant 0 : index
    %c3_82 = arith.constant 3 : index
    %c0_83 = arith.constant 0 : index
    %c0_84 = arith.constant 0 : index
    %136 = vector.load %arg2[%c0_81, %c3_82, %c0_83, %c0_84] : memref<1x4x16x16xf32, #tpu.memory_space<vmem>>, vector<1x1x16x16xf32>
    %137 = vector.shape_cast %136 : vector<1x1x16x16xf32> to vector<16x16xf32>
    %138 = vector.broadcast %135 : f32 to vector<16x16xf32>
    %139 = arith.mulf %138, %137 : vector<16x16xf32>
    %140 = arith.addf %133, %139 : vector<16x16xf32>
    %141 = arith.index_cast %113 : i32 to index
    %142 = memref.load %arg6[%141] : memref<8xf32, #tpu.memory_space<smem>>
    %143 = vector.broadcast %142 : f32 to vector<16x16xf32>
    %144 = arith.addf %140, %143 : vector<16x16xf32>
    %145 = vector.broadcast %0 : vector<16x1xf32> to vector<16x16xf32>
    %146 = arith.mulf %145, %144 : vector<16x16xf32>
    %147 = arith.truncf %146 : vector<16x16xf32> to vector<16x16xbf16>
    %c0_85 = arith.constant 0 : index
    %c48 = arith.constant 48 : index
    %148 = vector.load %arg8[%c0_85, %c48] : memref<16x128xbf16, #tpu.memory_space<vmem>>, vector<16x16xbf16>
    tpu.vector_store %arg8[%c0_85, %c48], %147 {strides = array<i32>} : memref<16x128xbf16, #tpu.memory_space<vmem>>, vector<16x16xbf16>,
    %c8_i32_86 = arith.constant 8 : i32
    %149 = arith.muli %arg1, %c8_i32_86 : i32
    %c4_i32 = arith.constant 4 : i32
    %150 = arith.addi %149, %c4_i32 : i32
    %c0_87 = arith.constant 0 : index
    %151 = arith.index_cast %150 : i32 to index
    %152 = memref.load %arg5[%c0_87, %151] : memref<4x8xf32, #tpu.memory_space<smem>>
    %c0_88 = arith.constant 0 : index
    %c0_89 = arith.constant 0 : index
    %c0_90 = arith.constant 0 : index
    %c0_91 = arith.constant 0 : index
    %153 = vector.load %arg2[%c0_88, %c0_89, %c0_90, %c0_91] : memref<1x4x16x16xf32, #tpu.memory_space<vmem>>, vector<1x1x16x16xf32>
    %154 = vector.shape_cast %153 : vector<1x1x16x16xf32> to vector<16x16xf32>
    %155 = vector.broadcast %152 : f32 to vector<16x16xf32>
    %156 = arith.mulf %155, %154 : vector<16x16xf32>
    %c1_92 = arith.constant 1 : index
    %157 = arith.index_cast %150 : i32 to index
    %158 = memref.load %arg5[%c1_92, %157] : memref<4x8xf32, #tpu.memory_space<smem>>
    %c0_93 = arith.constant 0 : index
    %c1_94 = arith.constant 1 : index
    %c0_95 = arith.constant 0 : index
    %c0_96 = arith.constant 0 : index
    %159 = vector.load %arg2[%c0_93, %c1_94, %c0_95, %c0_96] : memref<1x4x16x16xf32, #tpu.memory_space<vmem>>, vector<1x1x16x16xf32>
    %160 = vector.shape_cast %159 : vector<1x1x16x16xf32> to vector<16x16xf32>
    %161 = vector.broadcast %158 : f32 to vector<16x16xf32>
    %162 = arith.mulf %161, %160 : vector<16x16xf32>
    %163 = arith.addf %156, %162 : vector<16x16xf32>
    %c2_97 = arith.constant 2 : index
    %164 = arith.index_cast %150 : i32 to index
    %165 = memref.load %arg5[%c2_97, %164] : memref<4x8xf32, #tpu.memory_space<smem>>
    %c0_98 = arith.constant 0 : index
    %c2_99 = arith.constant 2 : index
    %c0_100 = arith.constant 0 : index
    %c0_101 = arith.constant 0 : index
    %166 = vector.load %arg2[%c0_98, %c2_99, %c0_100, %c0_101] : memref<1x4x16x16xf32, #tpu.memory_space<vmem>>, vector<1x1x16x16xf32>
    %167 = vector.shape_cast %166 : vector<1x1x16x16xf32> to vector<16x16xf32>
    %168 = vector.broadcast %165 : f32 to vector<16x16xf32>
    %169 = arith.mulf %168, %167 : vector<16x16xf32>
    %170 = arith.addf %163, %169 : vector<16x16xf32>
    %c3_102 = arith.constant 3 : index
    %171 = arith.index_cast %150 : i32 to index
    %172 = memref.load %arg5[%c3_102, %171] : memref<4x8xf32, #tpu.memory_space<smem>>
    %c0_103 = arith.constant 0 : index
    %c3_104 = arith.constant 3 : index
    %c0_105 = arith.constant 0 : index
    %c0_106 = arith.constant 0 : index
    %173 = vector.load %arg2[%c0_103, %c3_104, %c0_105, %c0_106] : memref<1x4x16x16xf32, #tpu.memory_space<vmem>>, vector<1x1x16x16xf32>
    %174 = vector.shape_cast %173 : vector<1x1x16x16xf32> to vector<16x16xf32>
    %175 = vector.broadcast %172 : f32 to vector<16x16xf32>
    %176 = arith.mulf %175, %174 : vector<16x16xf32>
    %177 = arith.addf %170, %176 : vector<16x16xf32>
    %178 = arith.index_cast %150 : i32 to index
    %179 = memref.load %arg6[%178] : memref<8xf32, #tpu.memory_space<smem>>
    %180 = vector.broadcast %179 : f32 to vector<16x16xf32>
    %181 = arith.addf %177, %180 : vector<16x16xf32>
    %182 = vector.broadcast %0 : vector<16x1xf32> to vector<16x16xf32>
    %183 = arith.mulf %182, %181 : vector<16x16xf32>
    %184 = arith.truncf %183 : vector<16x16xf32> to vector<16x16xbf16>
    %c0_107 = arith.constant 0 : index
    %c64 = arith.constant 64 : index
    %185 = vector.load %arg8[%c0_107, %c64] : memref<16x128xbf16, #tpu.memory_space<vmem>>, vector<16x16xbf16>
    tpu.vector_store %arg8[%c0_107, %c64], %184 {strides = array<i32>} : memref<16x128xbf16, #tpu.memory_space<vmem>>, vector<16x16xbf16>,
    %c8_i32_108 = arith.constant 8 : i32
    %186 = arith.muli %arg1, %c8_i32_108 : i32
    %c5_i32 = arith.constant 5 : i32
    %187 = arith.addi %186, %c5_i32 : i32
    %c0_109 = arith.constant 0 : index
    %188 = arith.index_cast %187 : i32 to index
    %189 = memref.load %arg5[%c0_109, %188] : memref<4x8xf32, #tpu.memory_space<smem>>
    %c0_110 = arith.constant 0 : index
    %c0_111 = arith.constant 0 : index
    %c0_112 = arith.constant 0 : index
    %c0_113 = arith.constant 0 : index
    %190 = vector.load %arg2[%c0_110, %c0_111, %c0_112, %c0_113] : memref<1x4x16x16xf32, #tpu.memory_space<vmem>>, vector<1x1x16x16xf32>
    %191 = vector.shape_cast %190 : vector<1x1x16x16xf32> to vector<16x16xf32>
    %192 = vector.broadcast %189 : f32 to vector<16x16xf32>
    %193 = arith.mulf %192, %191 : vector<16x16xf32>
    %c1_114 = arith.constant 1 : index
    %194 = arith.index_cast %187 : i32 to index
    %195 = memref.load %arg5[%c1_114, %194] : memref<4x8xf32, #tpu.memory_space<smem>>
    %c0_115 = arith.constant 0 : index
    %c1_116 = arith.constant 1 : index
    %c0_117 = arith.constant 0 : index
    %c0_118 = arith.constant 0 : index
    %196 = vector.load %arg2[%c0_115, %c1_116, %c0_117, %c0_118] : memref<1x4x16x16xf32, #tpu.memory_space<vmem>>, vector<1x1x16x16xf32>
    %197 = vector.shape_cast %196 : vector<1x1x16x16xf32> to vector<16x16xf32>
    %198 = vector.broadcast %195 : f32 to vector<16x16xf32>
    %199 = arith.mulf %198, %197 : vector<16x16xf32>
    %200 = arith.addf %193, %199 : vector<16x16xf32>
    %c2_119 = arith.constant 2 : index
    %201 = arith.index_cast %187 : i32 to index
    %202 = memref.load %arg5[%c2_119, %201] : memref<4x8xf32, #tpu.memory_space<smem>>
    %c0_120 = arith.constant 0 : index
    %c2_121 = arith.constant 2 : index
    %c0_122 = arith.constant 0 : index
    %c0_123 = arith.constant 0 : index
    %203 = vector.load %arg2[%c0_120, %c2_121, %c0_122, %c0_123] : memref<1x4x16x16xf32, #tpu.memory_space<vmem>>, vector<1x1x16x16xf32>
    %204 = vector.shape_cast %203 : vector<1x1x16x16xf32> to vector<16x16xf32>
    %205 = vector.broadcast %202 : f32 to vector<16x16xf32>
    %206 = arith.mulf %205, %204 : vector<16x16xf32>
    %207 = arith.addf %200, %206 : vector<16x16xf32>
    %c3_124 = arith.constant 3 : index
    %208 = arith.index_cast %187 : i32 to index
    %209 = memref.load %arg5[%c3_124, %208] : memref<4x8xf32, #tpu.memory_space<smem>>
    %c0_125 = arith.constant 0 : index
    %c3_126 = arith.constant 3 : index
    %c0_127 = arith.constant 0 : index
    %c0_128 = arith.constant 0 : index
    %210 = vector.load %arg2[%c0_125, %c3_126, %c0_127, %c0_128] : memref<1x4x16x16xf32, #tpu.memory_space<vmem>>, vector<1x1x16x16xf32>
    %211 = vector.shape_cast %210 : vector<1x1x16x16xf32> to vector<16x16xf32>
    %212 = vector.broadcast %209 : f32 to vector<16x16xf32>
    %213 = arith.mulf %212, %211 : vector<16x16xf32>
    %214 = arith.addf %207, %213 : vector<16x16xf32>
    %215 = arith.index_cast %187 : i32 to index
    %216 = memref.load %arg6[%215] : memref<8xf32, #tpu.memory_space<smem>>
    %217 = vector.broadcast %216 : f32 to vector<16x16xf32>
    %218 = arith.addf %214, %217 : vector<16x16xf32>
    %219 = vector.broadcast %0 : vector<16x1xf32> to vector<16x16xf32>
    %220 = arith.mulf %219, %218 : vector<16x16xf32>
    %221 = arith.truncf %220 : vector<16x16xf32> to vector<16x16xbf16>
    %c0_129 = arith.constant 0 : index
    %c80 = arith.constant 80 : index
    %222 = vector.load %arg8[%c0_129, %c80] : memref<16x128xbf16, #tpu.memory_space<vmem>>, vector<16x16xbf16>
    tpu.vector_store %arg8[%c0_129, %c80], %221 {strides = array<i32>} : memref<16x128xbf16, #tpu.memory_space<vmem>>, vector<16x16xbf16>,
    %c8_i32_130 = arith.constant 8 : i32
    %223 = arith.muli %arg1, %c8_i32_130 : i32
    %c6_i32 = arith.constant 6 : i32
    %224 = arith.addi %223, %c6_i32 : i32
    %c0_131 = arith.constant 0 : index
    %225 = arith.index_cast %224 : i32 to index
    %226 = memref.load %arg5[%c0_131, %225] : memref<4x8xf32, #tpu.memory_space<smem>>
    %c0_132 = arith.constant 0 : index
    %c0_133 = arith.constant 0 : index
    %c0_134 = arith.constant 0 : index
    %c0_135 = arith.constant 0 : index
    %227 = vector.load %arg2[%c0_132, %c0_133, %c0_134, %c0_135] : memref<1x4x16x16xf32, #tpu.memory_space<vmem>>, vector<1x1x16x16xf32>
    %228 = vector.shape_cast %227 : vector<1x1x16x16xf32> to vector<16x16xf32>
    %229 = vector.broadcast %226 : f32 to vector<16x16xf32>
    %230 = arith.mulf %229, %228 : vector<16x16xf32>
    %c1_136 = arith.constant 1 : index
    %231 = arith.index_cast %224 : i32 to index
    %232 = memref.load %arg5[%c1_136, %231] : memref<4x8xf32, #tpu.memory_space<smem>>
    %c0_137 = arith.constant 0 : index
    %c1_138 = arith.constant 1 : index
    %c0_139 = arith.constant 0 : index
    %c0_140 = arith.constant 0 : index
    %233 = vector.load %arg2[%c0_137, %c1_138, %c0_139, %c0_140] : memref<1x4x16x16xf32, #tpu.memory_space<vmem>>, vector<1x1x16x16xf32>
    %234 = vector.shape_cast %233 : vector<1x1x16x16xf32> to vector<16x16xf32>
    %235 = vector.broadcast %232 : f32 to vector<16x16xf32>
    %236 = arith.mulf %235, %234 : vector<16x16xf32>
    %237 = arith.addf %230, %236 : vector<16x16xf32>
    %c2_141 = arith.constant 2 : index
    %238 = arith.index_cast %224 : i32 to index
    %239 = memref.load %arg5[%c2_141, %238] : memref<4x8xf32, #tpu.memory_space<smem>>
    %c0_142 = arith.constant 0 : index
    %c2_143 = arith.constant 2 : index
    %c0_144 = arith.constant 0 : index
    %c0_145 = arith.constant 0 : index
    %240 = vector.load %arg2[%c0_142, %c2_143, %c0_144, %c0_145] : memref<1x4x16x16xf32, #tpu.memory_space<vmem>>, vector<1x1x16x16xf32>
    %241 = vector.shape_cast %240 : vector<1x1x16x16xf32> to vector<16x16xf32>
    %242 = vector.broadcast %239 : f32 to vector<16x16xf32>
    %243 = arith.mulf %242, %241 : vector<16x16xf32>
    %244 = arith.addf %237, %243 : vector<16x16xf32>
    %c3_146 = arith.constant 3 : index
    %245 = arith.index_cast %224 : i32 to index
    %246 = memref.load %arg5[%c3_146, %245] : memref<4x8xf32, #tpu.memory_space<smem>>
    %c0_147 = arith.constant 0 : index
    %c3_148 = arith.constant 3 : index
    %c0_149 = arith.constant 0 : index
    %c0_150 = arith.constant 0 : index
    %247 = vector.load %arg2[%c0_147, %c3_148, %c0_149, %c0_150] : memref<1x4x16x16xf32, #tpu.memory_space<vmem>>, vector<1x1x16x16xf32>
    %248 = vector.shape_cast %247 : vector<1x1x16x16xf32> to vector<16x16xf32>
    %249 = vector.broadcast %246 : f32 to vector<16x16xf32>
    %250 = arith.mulf %249, %248 : vector<16x16xf32>
    %251 = arith.addf %244, %250 : vector<16x16xf32>
    %252 = arith.index_cast %224 : i32 to index
    %253 = memref.load %arg6[%252] : memref<8xf32, #tpu.memory_space<smem>>
    %254 = vector.broadcast %253 : f32 to vector<16x16xf32>
    %255 = arith.addf %251, %254 : vector<16x16xf32>
    %256 = vector.broadcast %0 : vector<16x1xf32> to vector<16x16xf32>
    %257 = arith.mulf %256, %255 : vector<16x16xf32>
    %258 = arith.truncf %257 : vector<16x16xf32> to vector<16x16xbf16>
    %c0_151 = arith.constant 0 : index
    %c96 = arith.constant 96 : index
    %259 = vector.load %arg8[%c0_151, %c96] : memref<16x128xbf16, #tpu.memory_space<vmem>>, vector<16x16xbf16>
    tpu.vector_store %arg8[%c0_151, %c96], %258 {strides = array<i32>} : memref<16x128xbf16, #tpu.memory_space<vmem>>, vector<16x16xbf16>,
    %c8_i32_152 = arith.constant 8 : i32
    %260 = arith.muli %arg1, %c8_i32_152 : i32
    %c7_i32 = arith.constant 7 : i32
    %261 = arith.addi %260, %c7_i32 : i32
    %c0_153 = arith.constant 0 : index
    %262 = arith.index_cast %261 : i32 to index
    %263 = memref.load %arg5[%c0_153, %262] : memref<4x8xf32, #tpu.memory_space<smem>>
    %c0_154 = arith.constant 0 : index
    %c0_155 = arith.constant 0 : index
    %c0_156 = arith.constant 0 : index
    %c0_157 = arith.constant 0 : index
    %264 = vector.load %arg2[%c0_154, %c0_155, %c0_156, %c0_157] : memref<1x4x16x16xf32, #tpu.memory_space<vmem>>, vector<1x1x16x16xf32>
    %265 = vector.shape_cast %264 : vector<1x1x16x16xf32> to vector<16x16xf32>
    %266 = vector.broadcast %263 : f32 to vector<16x16xf32>
    %267 = arith.mulf %266, %265 : vector<16x16xf32>
    %c1_158 = arith.constant 1 : index
    %268 = arith.index_cast %261 : i32 to index
    %269 = memref.load %arg5[%c1_158, %268] : memref<4x8xf32, #tpu.memory_space<smem>>
    %c0_159 = arith.constant 0 : index
    %c1_160 = arith.constant 1 : index
    %c0_161 = arith.constant 0 : index
    %c0_162 = arith.constant 0 : index
    %270 = vector.load %arg2[%c0_159, %c1_160, %c0_161, %c0_162] : memref<1x4x16x16xf32, #tpu.memory_space<vmem>>, vector<1x1x16x16xf32>
    %271 = vector.shape_cast %270 : vector<1x1x16x16xf32> to vector<16x16xf32>
    %272 = vector.broadcast %269 : f32 to vector<16x16xf32>
    %273 = arith.mulf %272, %271 : vector<16x16xf32>
    %274 = arith.addf %267, %273 : vector<16x16xf32>
    %c2_163 = arith.constant 2 : index
    %275 = arith.index_cast %261 : i32 to index
    %276 = memref.load %arg5[%c2_163, %275] : memref<4x8xf32, #tpu.memory_space<smem>>
    %c0_164 = arith.constant 0 : index
    %c2_165 = arith.constant 2 : index
    %c0_166 = arith.constant 0 : index
    %c0_167 = arith.constant 0 : index
    %277 = vector.load %arg2[%c0_164, %c2_165, %c0_166, %c0_167] : memref<1x4x16x16xf32, #tpu.memory_space<vmem>>, vector<1x1x16x16xf32>
    %278 = vector.shape_cast %277 : vector<1x1x16x16xf32> to vector<16x16xf32>
    %279 = vector.broadcast %276 : f32 to vector<16x16xf32>
    %280 = arith.mulf %279, %278 : vector<16x16xf32>
    %281 = arith.addf %274, %280 : vector<16x16xf32>
    %c3_168 = arith.constant 3 : index
    %282 = arith.index_cast %261 : i32 to index
    %283 = memref.load %arg5[%c3_168, %282] : memref<4x8xf32, #tpu.memory_space<smem>>
    %c0_169 = arith.constant 0 : index
    %c3_170 = arith.constant 3 : index
    %c0_171 = arith.constant 0 : index
    %c0_172 = arith.constant 0 : index
    %284 = vector.load %arg2[%c0_169, %c3_170, %c0_171, %c0_172] : memref<1x4x16x16xf32, #tpu.memory_space<vmem>>, vector<1x1x16x16xf32>
    %285 = vector.shape_cast %284 : vector<1x1x16x16xf32> to vector<16x16xf32>
    %286 = vector.broadcast %283 : f32 to vector<16x16xf32>
    %287 = arith.mulf %286, %285 : vector<16x16xf32>
    %288 = arith.addf %281, %287 : vector<16x16xf32>
    %289 = arith.index_cast %261 : i32 to index
    %290 = memref.load %arg6[%289] : memref<8xf32, #tpu.memory_space<smem>>
    %291 = vector.broadcast %290 : f32 to vector<16x16xf32>
    %292 = arith.addf %288, %291 : vector<16x16xf32>
    %293 = vector.broadcast %0 : vector<16x1xf32> to vector<16x16xf32>
    %294 = arith.mulf %293, %292 : vector<16x16xf32>
    %295 = arith.truncf %294 : vector<16x16xf32> to vector<16x16xbf16>
    %c0_173 = arith.constant 0 : index
    %c112 = arith.constant 112 : index
    %296 = vector.load %arg8[%c0_173, %c112] : memref<16x128xbf16, #tpu.memory_space<vmem>>, vector<16x16xbf16>
    tpu.vector_store %arg8[%c0_173, %c112], %295 {strides = array<i32>} : memref<16x128xbf16, #tpu.memory_space<vmem>>, vector<16x16xbf16>,
    %c0_174 = arith.constant 0 : index
    %c0_175 = arith.constant 0 : index
    %297 = vector.load %arg8[%c0_174, %c0_175] : memref<16x128xbf16, #tpu.memory_space<vmem>>, vector<16x128xbf16>
    %c0_176 = arith.constant 0 : index
    %c0_177 = arith.constant 0 : index
    %298 = vector.load %arg3[%c0_176, %c0_177] : memref<16x16xbf16, #tpu.memory_space<vmem>>, vector<16x16xbf16>
    %cst = arith.constant dense<0.000000e+00> : vector<16x128xf32>
    %299 = tpu.matmul %298, %297, %cst {dimension_numbers = #tpu.dot_dimension_numbers<[1], [0], [0], [1], [0, 0, 1, 1], [], []>} : vector<16x16xbf16>, vector<16x128xbf16>, vector<16x128xf32> -> vector<16x128xf32>
    %300 = arith.extf %297 : vector<16x128xbf16> to vector<16x128xf32>
    %301 = arith.addf %299, %300 : vector<16x128xf32>
    %302 = vector.broadcast %0 : vector<16x1xf32> to vector<16x128xf32>
    %303 = arith.mulf %302, %301 : vector<16x128xf32>
    %cst_178 = arith.constant 0.000000e+00 : f32
    %304 = vector.broadcast %cst_178 : f32 to vector<16x128xf32>
    %305 = arith.cmpf oge, %303, %304 : vector<16x128xf32>
    %cst_179 = arith.constant 0.00999999977 : f32
    %306 = vector.broadcast %cst_179 : f32 to vector<16x128xf32>
    %307 = arith.mulf %306, %303 : vector<16x128xf32>
    %308 = arith.select %305, %303, %307 : vector<16x128xi1>, vector<16x128xf32>
    %c0_180 = arith.constant 0 : index
    %c0_181 = arith.constant 0 : index
    %c0_182 = arith.constant 0 : index
    %309 = vector.load %arg7[%c0_180, %c0_181, %c0_182] : memref<1x16x128xf32, #tpu.memory_space<vmem>>, vector<1x16x128xf32>
    %310 = vector.shape_cast %309 : vector<1x16x128xf32> to vector<16x128xf32>
    %311 = vector.shape_cast %308 : vector<16x128xf32> to vector<1x16x128xf32>
    tpu.vector_store %arg7[%c0_180, %c0_181, %c0_182], %311 {strides = array<i32>} : memref<1x16x128xf32, #tpu.memory_space<vmem>>, vector<1x16x128xf32>,
    return
  }
  func.func @transform_0(%arg0: i32, %arg1: i32) -> (i32, i32, i32, i32) {
    %c0_i32 = arith.constant 0 : i32
    %c0_i32_0 = arith.constant 0 : i32
    %c0_i32_1 = arith.constant 0 : i32
    %c0_i32_2 = arith.constant 0 : i32
    return %arg0, %c0_i32, %c0_i32_0, %c0_i32_1 : i32, i32, i32, i32
  }
  func.func @transform_1(%arg0: i32, %arg1: i32) -> (i32, i32) {
    %c0_i32 = arith.constant 0 : i32
    %c0_i32_0 = arith.constant 0 : i32
    %c0_i32_1 = arith.constant 0 : i32
    return %c0_i32, %c0_i32_0 : i32, i32
  }
  func.func @transform_2(%arg0: i32, %arg1: i32) -> (i32, i32) {
    %c0_i32 = arith.constant 0 : i32
    %c0_i32_0 = arith.constant 0 : i32
    %c0_i32_1 = arith.constant 0 : i32
    return %c0_i32, %c0_i32_0 : i32, i32
  }
  func.func @transform_3(%arg0: i32, %arg1: i32) -> (i32, i32) {
    %c0_i32 = arith.constant 0 : i32
    %c0_i32_0 = arith.constant 0 : i32
    %c0_i32_1 = arith.constant 0 : i32
    return %c0_i32, %c0_i32_0 : i32, i32
  }
  func.func @transform_4(%arg0: i32, %arg1: i32) -> i32 {
    %c0_i32 = arith.constant 0 : i32
    %c0_i32_0 = arith.constant 0 : i32
    return %c0_i32 : i32
  }
  func.func @transform_5(%arg0: i32, %arg1: i32) -> (i32, i32, i32) {
    %c0_i32 = arith.constant 0 : i32
    %c0_i32_0 = arith.constant 0 : i32
    return %arg0, %c0_i32, %arg1 : i32, i32, i32
  }
}

</mosaic_0001>

<llo_original>
// kernel: tpu_custom_call.1
$region0: #{tpu_custom_call.1}
  #allocation0 [shape = 'u32[]', space=smem, size = 0x4, offset = 0x4, fixed_abs, tag = 'smem constant byte address 0x4 - core index']
  #allocation1 [shape = 'u32[72,128]{1,0:T(1,128)}', space=vmem, size = 0x9000, scoped, tag = 'internal scratch']
  #allocation2 [shape = 'bf16[16,128]{1,0:T(8,128)(2,1)}', space=vmem, size = 0x1000, scoped, tag = 'scratch operand']
  %s0 = inlined_call_operand.hbm [shape: f32[2,4,16,16], index: 0, kind: input, shape index: {}]
  %s1 = inlined_call_operand.vmem [shape: bf16[16,16], index: 1, kind: input, shape index: {}]
  %s2 = inlined_call_operand.vmem [shape: f32[16,1], index: 2, kind: input, shape index: {}]
  %s3 = inlined_call_operand.vmem [shape: f32[4,8], index: 3, kind: input, shape index: {}]
  %s4 = inlined_call_operand.vmem [shape: f32[8], index: 4, kind: input, shape index: {}]
  %s5 = inlined_call_operand.hbm [shape: f32[2,16,128], index: 5, kind: output, shape index: {}]
  %s6 = sld [smem:[#allocation0]]
  $region65: #{tpu_custom_call.1} parent=0
    _
  %s8 = ssub.s32 1, %s6
  %s9 = scalar_select 0, %s8, %s6
  $region1: #{tpu_custom_call.1} parent=0
    #allocation3 [shape = 'u8[65536]{0}', space=vmem, size = 0x10000, scoped, tag = 'input window, operand 0']
    #allocation4 [shape = 's32[2]{0}', space=sflag, size = 0x8, scoped, tag = 'scoped memory for tpu_custom_call.1']
    #allocation5 [shape = 's32[2]{0}', space=sflag, size = 0x8, scoped, tag = 'scoped memory for tpu_custom_call.1']
    #allocation6 [shape = 's32[2]{0}', space=sflag, size = 0x8, scoped, tag = 'scoped memory for tpu_custom_call.1']
    #allocation7 [shape = 'u8[2048]{0}', space=smem, size = 0x800, scoped, tag = 'input window, operand 3, single buffered']
    #allocation8 [shape = 'u8[512]{0}', space=smem, size = 0x200, scoped, tag = 'input window, operand 4, single buffered']
    #allocation9 [shape = 's32[1]{0}', space=sflag, size = 0x4, scoped, tag = 'scoped memory for tpu_custom_call.1']
    #allocation10 [shape = 'u8[16384]{0}', space=vmem, size = 0x4000, scoped, tag = 'output window, operand 0']
    %10 = vsyncpa [#allocation4], 0
    %s11 = scalar_lea.sflag [#allocation4], 1
    %12 = vsyncpa %s11, 0
    %13 = vsyncpa [#allocation6], 0
    %14 = vsyncpa [#allocation9], 0
    %15 = vsyncpa [#allocation5], 0
    %s16 = scalar_lea.sflag [#allocation5], 1
    %17 = vsyncpa %s16, 0
    loop: start=0, step=1, limit=4
    $region2: #{tpu_custom_call.1} parent=1 // loop_pre_header
      _
    $region3: #{tpu_custom_call.1} parent=1 // loop_header
      %s19 = sphi 0, %s23
      %p20 = scmp.ge.s32.totalorder %s19, 4
      %s26 = sphi 0, %s38
      %s27 = sphi 0, %s34
      %s28 = sphi 0, %s26
      %s29 = sphi 0, %s27
      %s30 = sphi 0, %s28
      %s31 = sphi 0, %s29
      %s41 = sphi 0, %s43
      %s44 = sphi 0, %s41
      %s45 = sphi 0, %s44
      %s61 = sphi 0, %s45
      %s65 = sphi 0, %s65
      %s67 = sphi 0, %s65
      %s68 = sphi 0, %s67
      %s82 = sphi 0, %s68
      %s86 = sphi 0, %s86
      %s88 = sphi 0, %s86
      %s89 = sphi 0, %s88
      %s103 = sphi 0, %s89
      %s107 = sphi 0, %s107
      %s109 = sphi 0, %s107
      %s110 = sphi 0, %s109
      %s124 = sphi 0, %s110
      %s128 = sphi 0, %s128
      %s130 = sphi 0, %s128
      %s131 = sphi 0, %s130
      %s145 = sphi 0, %s131
      %s153 = sphi 0, %s155
      %s156 = sphi 0, %s153
      %s157 = sphi 0, %s156
      %s173 = sphi 0, %s157
    $region4: #{tpu_custom_call.1} parent=1 // loop_header_branch
      %22 = sbr.rel (%p20) target = $region8
    $region5: #{tpu_custom_call.1} parent=1 // loop_body
      %s24 = ssub.s32 %s19, 1
      %s25 = ssub.s32 %s19, 2
      %s32 = sadd.s32 1, %s27
      %p33 = scmp.ge.s32.totalorder %s32, 1
      %s34 = scalar_select %p33, 0, %s32
      %s35 = sadd.s32 1, %s26
      %s36 = scalar_select %p33, %s35, %s26
      %p37 = scmp.ge.s32.totalorder %s36, 2
      %s38 = scalar_select %p37, 0, %s36
      %s39 = ssub.s32 %s26, %s38
      %p40 = scmp.eq.s32.totalorder %s39, 0
      %s42 = sadd.s32 %s41, 1
      %s43 = scalar_select %p40, %s41, %s42
      %p46 = pneg %p40
      %p47 = scmp.eq.s32.totalorder %s19, 1
      %p48 = por %p46, %p47
      %p49 = scmp.ne.s32.totalorder %s41, %s44
      %p50 = scmp.eq.s32.totalorder %s19, 0
      %p51 = por %p49, %p50
      %p52 = scmp.ne.s32.totalorder %s41, %s44
      %p53 = scmp.eq.s32.totalorder %s24, 1
      %p54 = por %p52, %p53
      %p55 = scmp.ne.s32.totalorder %s44, %s45
      %p56 = scmp.eq.s32.totalorder %s24, 0
      %p57 = por %p55, %p56
      %p58 = scmp.ne.s32.totalorder %s44, %s45
      %p59 = scmp.eq.s32.totalorder %s25, 1
      %p60 = por %p58, %p59
      %p62 = scmp.ne.s32.totalorder %s45, %s61
      %p63 = scmp.eq.s32.totalorder %s25, 0
      %p64 = por %p62, %p63
      %s66 = sadd.s32 %s65, 1
      %p69 = scmp.eq.s32.totalorder %s19, 1
      %p70 = scmp.ne.s32.totalorder %s65, %s67
      %p71 = scmp.eq.s32.totalorder %s19, 0
      %p72 = por %p70, %p71
      %p73 = scmp.ne.s32.totalorder %s65, %s67
      %p74 = scmp.eq.s32.totalorder %s24, 1
      %p75 = por %p73, %p74
      %p76 = scmp.ne.s32.totalorder %s67, %s68
      %p77 = scmp.eq.s32.totalorder %s24, 0
      %p78 = por %p76, %p77
      %p79 = scmp.ne.s32.totalorder %s67, %s68
      %p80 = scmp.eq.s32.totalorder %s25, 1
      %p81 = por %p79, %p80
      %p83 = scmp.ne.s32.totalorder %s68, %s82
      %p84 = scmp.eq.s32.totalorder %s25, 0
      %p85 = por %p83, %p84
      %s87 = sadd.s32 %s86, 1
      %p90 = scmp.eq.s32.totalorder %s19, 1
      %p91 = scmp.ne.s32.totalorder %s86, %s88
      %p92 = scmp.eq.s32.totalorder %s19, 0
      %p93 = por %p91, %p92
      %p94 = scmp.ne.s32.totalorder %s86, %s88
      %p95 = scmp.eq.s32.totalorder %s24, 1
      %p96 = por %p94, %p95
      %p97 = scmp.ne.s32.totalorder %s88, %s89
      %p98 = scmp.eq.s32.totalorder %s24, 0
      %p99 = por %p97, %p98
      %p100 = scmp.ne.s32.totalorder %s88, %s89
      %p101 = scmp.eq.s32.totalorder %s25, 1
      %p102 = por %p100, %p101
      %p104 = scmp.ne.s32.totalorder %s89, %s103
      %p105 = scmp.eq.s32.totalorder %s25, 0
      %p106 = por %p104, %p105
      %s108 = sadd.s32 %s107, 1
      %p111 = scmp.eq.s32.totalorder %s19, 1
      %p112 = scmp.ne.s32.totalorder %s107, %s109
      %p113 = scmp.eq.s32.totalorder %s19, 0
      %p114 = por %p112, %p113
      %p115 = scmp.ne.s32.totalorder %s107, %s109
      %p116 = scmp.eq.s32.totalorder %s24, 1
      %p117 = por %p115, %p116
      %p118 = scmp.ne.s32.totalorder %s109, %s110
      %p119 = scmp.eq.s32.totalorder %s24, 0
      %p120 = por %p118, %p119
      %p121 = scmp.ne.s32.totalorder %s109, %s110
      %p122 = scmp.eq.s32.totalorder %s25, 1
      %p123 = por %p121, %p122
      %p125 = scmp.ne.s32.totalorder %s110, %s124
      %p126 = scmp.eq.s32.totalorder %s25, 0
      %p127 = por %p125, %p126
      %s129 = sadd.s32 %s128, 1
      %p132 = scmp.eq.s32.totalorder %s19, 1
      %p133 = scmp.ne.s32.totalorder %s128, %s130
      %p134 = scmp.eq.s32.totalorder %s19, 0
      %p135 = por %p133, %p134
      %p136 = scmp.ne.s32.totalorder %s128, %s130
      %p137 = scmp.eq.s32.totalorder %s24, 1
      %p138 = por %p136, %p137
      %p139 = scmp.ne.s32.totalorder %s130, %s131
      %p140 = scmp.eq.s32.totalorder %s24, 0
      %p141 = por %p139, %p140
      %p142 = scmp.ne.s32.totalorder %s130, %s131
      %p143 = scmp.eq.s32.totalorder %s25, 1
      %p144 = por %p142, %p143
      %p146 = scmp.ne.s32.totalorder %s131, %s145
      %p147 = scmp.eq.s32.totalorder %s25, 0
      %p148 = por %p146, %p147
      %s149 = ssub.s32 %s26, %s38
      %s150 = ssub.s32 %s27, %s34
      %s151 = sor.u32 %s149, %s150
      %p152 = scmp.eq.s32.totalorder %s151, 0
      %s154 = sadd.s32 %s153, 1
      %s155 = scalar_select %p152, %s153, %s154
      %p158 = pneg %p152
      %p159 = scmp.eq.s32.totalorder %s19, 1
      %p160 = por %p158, %p159
      %p161 = scmp.ne.s32.totalorder %s153, %s156
      %p162 = scmp.eq.s32.totalorder %s19, 0
      %p163 = por %p161, %p162
      %p164 = scmp.ne.s32.totalorder %s153, %s156
      %p165 = scmp.eq.s32.totalorder %s24, 1
      %p166 = por %p164, %p165
      %p167 = scmp.ne.s32.totalorder %s156, %s157
      %p168 = scmp.eq.s32.totalorder %s24, 0
      %p169 = por %p167, %p168
      %p170 = scmp.ne.s32.totalorder %s156, %s157
      %p171 = scmp.eq.s32.totalorder %s25, 1
      %p172 = por %p170, %p171
      %p174 = scmp.ne.s32.totalorder %s157, %s173
      %p175 = scmp.eq.s32.totalorder %s25, 0
      %p176 = por %p174, %p175
      %p177 = scmp.le.s32.totalorder 1, %s19
      %p178 = scmp.lt.s32.totalorder %s19, 3
      %p179 = pnand %p177, %p178
      %p180 = pneg %p179
      // Predicated region
      $region9: #{tpu_custom_call.1} parent=5 // pred_check
        _
      $region10: #{tpu_custom_call.1} parent=5 // pred_check_branch
        %182 = sbr.rel (%p179) target = $region12
      $region11: #{tpu_custom_call.1} parent=5 // pred_region
        %s183 = ssub.s32 %s19, 1
        // Predicated region
        $region13: #{tpu_custom_call.1} parent=11 // pred_check
          %p184 = pneg %p78
        $region14: #{tpu_custom_call.1} parent=11 // pred_check_branch
          %186 = sbr.rel (%p184) target = $region16
        $region15: #{tpu_custom_call.1} parent=11 // pred_region
          _
        $region16: #{tpu_custom_call.1} parent=11 // pred_fallthru
          _
        // Predicated region
        $region17: #{tpu_custom_call.1} parent=11 // pred_check
          %p187 = pneg %p99
        $region18: #{tpu_custom_call.1} parent=11 // pred_check_branch
          %189 = sbr.rel (%p187) target = $region20
        $region19: #{tpu_custom_call.1} parent=11 // pred_region
          _
        $region20: #{tpu_custom_call.1} parent=11 // pred_fallthru
          _
        // Predicated region
        $region21: #{tpu_custom_call.1} parent=11 // pred_check
          %p190 = pneg %p120
        $region22: #{tpu_custom_call.1} parent=11 // pred_check_branch
          %192 = sbr.rel (%p190) target = $region24
        $region23: #{tpu_custom_call.1} parent=11 // pred_region
          %194 = vsyncadd [#allocation6], 0
          %s196 = sshll.u32 %s3, 4
          %s197 = int_to_ptr.vmem [resolvable:$true] %s196
          %199 = dma.vmem_to_smem %s197, 64, [#allocation7], [#allocation6]
        $region24: #{tpu_custom_call.1} parent=11 // pred_fallthru
          _
        // Predicated region
        $region25: #{tpu_custom_call.1} parent=11 // pred_check
          %p200 = pneg %p141
        $region26: #{tpu_custom_call.1} parent=11 // pred_check_branch
          %202 = sbr.rel (%p200) target = $region28
        $region27: #{tpu_custom_call.1} parent=11 // pred_region
          %204 = vsyncadd [#allocation9], 0
          %s206 = sshll.u32 %s4, 4
          %s207 = int_to_ptr.vmem [resolvable:$true] %s206
          %209 = dma.vmem_to_smem %s207, 16, [#allocation8], [#allocation9]
        $region28: #{tpu_custom_call.1} parent=11 // pred_fallthru
          _
      $region12: #{tpu_custom_call.1} parent=5 // pred_fallthru
        _
      %p210 = scmp.lt.s32.totalorder %s19, 2
      // Predicated region
      $region29: #{tpu_custom_call.1} parent=5 // pred_check
        %p211 = pneg %p210
      $region30: #{tpu_custom_call.1} parent=5 // pred_check_branch
        %213 = sbr.rel (%p211) target = $region32
      $region31: #{tpu_custom_call.1} parent=5 // pred_region
        // Predicated region
        $region33: #{tpu_custom_call.1} parent=31 // pred_check
          %p214 = pneg %p51
        $region34: #{tpu_custom_call.1} parent=31 // pred_check_branch
          %216 = sbr.rel (%p214) target = $region36
        $region35: #{tpu_custom_call.1} parent=31 // pred_region
          %s217 = sand.u32 %s41, 1
          %s218 = scalar_lea.sflag [#allocation4], %s217
          %s219 = sand.u32 %s41, 1
          %s220 = smul.addr %s219, 64
          %s221 = scalar_lea.vmem [#allocation3], %s220
          %223 = vsyncadd %s218, 0
          %s224 = smul.addr %s26, 8
          %s225 = smul.addr %s224, 8
          %s226 = scalar_lea.hbm %s0, %s225
          %s227 = sshll.u32 %s226, 4
          %s228 = int_to_ptr.hbm [resolvable:$true] %s227
          %s229 = sshll.u32 %s221, 4
          %s230 = int_to_ptr.vmem [resolvable:$true] %s229
          %235 = dma.hbm_to_vmem [thread:$0]  %s228, 1024, %s230, %s218, 128, 128, 8
        $region36: #{tpu_custom_call.1} parent=31 // pred_fallthru
          _
      $region32: #{tpu_custom_call.1} parent=5 // pred_fallthru
        _
      %p236 = scmp.le.s32.totalorder 1, %s19
      %p237 = scmp.lt.s32.totalorder %s19, 3
      %p238 = pnand %p236, %p237
      %p239 = pneg %p238
      // Predicated region
      $region37: #{tpu_custom_call.1} parent=5 // pred_check
        _
      $region38: #{tpu_custom_call.1} parent=5 // pred_check_branch
        %241 = sbr.rel (%p238) target = $region40
      $region39: #{tpu_custom_call.1} parent=5 // pred_region
        %s242 = ssub.s32 %s19, 1
        %s243 = sand.u32 %s44, 1
        %s244 = scalar_lea.sflag [#allocation4], %s243
        %s245 = sand.u32 %s44, 1
        %s246 = smul.addr %s245, 64
        %s247 = scalar_lea.vmem [#allocation3], %s246
        // Predicated region
        $region41: #{tpu_custom_call.1} parent=39 // pred_check
          %p248 = pneg %p57
        $region42: #{tpu_custom_call.1} parent=39 // pred_check_branch
          %250 = sbr.rel (%p248) target = $region44
        $region43: #{tpu_custom_call.1} parent=39 // pred_region
          %252 = dma.done %s244, 1024
        $region44: #{tpu_custom_call.1} parent=39 // pred_fallthru
          _
        // Predicated region
        $region45: #{tpu_custom_call.1} parent=39 // pred_check
          %p253 = pneg %p120
        $region46: #{tpu_custom_call.1} parent=39 // pred_check_branch
          %255 = sbr.rel (%p253) target = $region48
        $region47: #{tpu_custom_call.1} parent=39 // pred_region
          %257 = dma.done [#allocation6], 64
        $region48: #{tpu_custom_call.1} parent=39 // pred_fallthru
          _
        // Predicated region
        $region49: #{tpu_custom_call.1} parent=39 // pred_check
          %p258 = pneg %p141
        $region50: #{tpu_custom_call.1} parent=39 // pred_check_branch
          %260 = sbr.rel (%p258) target = $region52
        $region51: #{tpu_custom_call.1} parent=39 // pred_region
          %262 = dma.done [#allocation9], 16
        $region52: #{tpu_custom_call.1} parent=39 // pred_fallthru
          _
        %263 = sfence
        %s264 = sand.u32 %s44, 1
        %s265 = scalar_lea.sflag [#allocation4], %s264
        %s266 = sand.u32 %s44, 1
        %s267 = smul.addr %s266, 64
        %s268 = scalar_lea.vmem [#allocation3], %s267
        %p269 = pneg %p57
        %p270 = pneg %p54
        %p271 = pneg %p78
        %p272 = pneg %p75
        %p273 = pneg %p99
        %p274 = pneg %p96
        %p275 = pneg %p120
        %p276 = pneg %p117
        %p277 = pneg %p141
        %p278 = pneg %p138
        %p279 = pneg %p169
        %p280 = pneg %p166
        %s281 = sand.u32 %s156, 1
        %s282 = scalar_lea.sflag [#allocation5], %s281
        %s283 = sand.u32 %s156, 1
        %s284 = smul.addr %s283, 16
        %s285 = scalar_lea.vmem [#allocation10], %s284
        %v287 = vld [vmem:[%s2] sm:$0xff]
        %v288 = vld [vmem:[%s2 + $0x8] sm:$0xff]
        %s289 = smul.u32 %s29, 8
        %s290 = sld [smem:[#allocation7 + %s289]]
        %v291 = vld [vmem:[%s247] sm:$0xff]
        %v292 = vld [vmem:[%s247 + $0x8] sm:$0xff]
        %v293 = vstv %s290
        %v294 = vmul.f32 %v293, %v291
        %v295 = vmul.f32 %v293, %v292
        %s296 = sshra.s32 %s289, 7
        %s297 = sand.u32 %s289, 127
        %s298 = sadd.s32 %s296, 1
        %s299 = smul.u32 %s298, 128
        %s300 = sshra.s32 %s289, 7
        %s301 = sand.u32 %s289, 127
        %s302 = sadd.s32 %s299, %s301
        %s303 = sld [smem:[#allocation7 + %s302]]
        %s304 = scalar_lea.vmem %s247, 16 [#allocation3]
        %v305 = vld [vmem:[%s304] sm:$0xff]
        %v306 = vld [vmem:[%s304 + $0x8] sm:$0xff]
        %v307 = vstv %s303
        %v308 = vmul.f32 %v307, %v305
        %v309 = vmul.f32 %v307, %v306
        %v310 = vadd.f32 %v294, %v308
        %v311 = vadd.f32 %v295, %v309
        %s312 = sadd.s32 %s296, 2
        %s313 = smul.u32 %s312, 128
        %s314 = sadd.s32 %s313, %s301
        %s315 = sld [smem:[#allocation7 + %s314]]
        %s316 = scalar_lea.vmem %s247, 32 [#allocation3]
        %v317 = vld [vmem:[%s316] sm:$0xff]
        %v318 = vld [vmem:[%s316 + $0x8] sm:$0xff]
        %v319 = vstv %s315
        %v320 = vmul.f32 %v319, %v317
        %v321 = vmul.f32 %v319, %v318
        %v322 = vadd.f32 %v310, %v320
        %v323 = vadd.f32 %v311, %v321
        %s324 = sadd.s32 %s296, 3
        %s325 = smul.u32 %s324, 128
        %s326 = sadd.s32 %s325, %s301
        %s327 = sld [smem:[#allocation7 + %s326]]
        %s328 = scalar_lea.vmem %s247, 48 [#allocation3]
        %v329 = vld [vmem:[%s328] sm:$0xff]
        %v330 = vld [vmem:[%s328 + $0x8] sm:$0xff]
        %v331 = vstv %s327
        %v332 = vmul.f32 %v331, %v329
        %v333 = vmul.f32 %v331, %v330
        %v334 = vadd.f32 %v322, %v332
        %v335 = vadd.f32 %v323, %v333
        %s336 = sld [smem:[#allocation8 + %s289]]
        %v337 = vstv %s336
        %v338 = vadd.f32 %v334, %v337
        %v339 = vadd.f32 %v335, %v337
        %341 = vset.pattern.permute.xlu0 0
        %342 = vperm.xlu0 %341, %v287
        %v343 = vpop.permute.xlu0 %342
        %346 = vset.pattern.permute.xlu0 0
        %347 = vperm.xlu0 %346, %v288
        %v348 = vpop.permute.xlu0 %347
        %v350 = vmul.f32 %v343, %v338
        %v351 = vmul.f32 %v348, %v339
        %v352 = vpack.c.bf16 %v350, %v350
        %v353 = vpack.c.bf16 %v351, %v351
        %vm354 = vcmask 125952
        %355 = vst.msk [vmem:[#allocation2] sm:$0xf] %vm354, %v352
        %356 = vst.msk [vmem:[#allocation2 + $0x4] sm:$0xf] %vm354, %v353
        %s357 = sadd.s32 %s289, 1
        %s358 = sld [smem:[#allocation7 + %s357]]
        %v359 = vld [vmem:[%s247] sm:$0xff]
        %v360 = vld [vmem:[%s247 + $0x8] sm:$0xff]
        %v361 = vstv %s358
        %v362 = vmul.f32 %v361, %v359
        %v363 = vmul.f32 %v361, %v360
        %s364 = sshra.s32 %s357, 7
        %s365 = sand.u32 %s357, 127
        %s366 = sadd.s32 %s364, 1
        %s367 = smul.u32 %s366, 128
        %s368 = sshra.s32 %s357, 7
        %s369 = sand.u32 %s357, 127
        %s370 = sadd.s32 %s367, %s369
        %s371 = sld [smem:[#allocation7 + %s370]]
        %v372 = vld [vmem:[%s304] sm:$0xff]
        %v373 = vld [vmem:[%s304 + $0x8] sm:$0xff]
        %v374 = vstv %s371
        %v375 = vmul.f32 %v374, %v372
        %v376 = vmul.f32 %v374, %v373
        %v377 = vadd.f32 %v362, %v375
        %v378 = vadd.f32 %v363, %v376
        %s379 = sadd.s32 %s364, 2
        %s380 = smul.u32 %s379, 128
        %s381 = sadd.s32 %s380, %s369
        %s382 = sld [smem:[#allocation7 + %s381]]
        %v383 = vld [vmem:[%s316] sm:$0xff]
        %v384 = vld [vmem:[%s316 + $0x8] sm:$0xff]
        %v385 = vstv %s382
        %v386 = vmul.f32 %v385, %v383
        %v387 = vmul.f32 %v385, %v384
        %v388 = vadd.f32 %v377, %v386
        %v389 = vadd.f32 %v378, %v387
        %s390 = sadd.s32 %s364, 3
        %s391 = smul.u32 %s390, 128
        %s392 = sadd.s32 %s391, %s369
        %s393 = sld [smem:[#allocation7 + %s392]]
        %v394 = vld [vmem:[%s328] sm:$0xff]
        %v395 = vld [vmem:[%s328 + $0x8] sm:$0xff]
        %v396 = vstv %s393
        %v397 = vmul.f32 %v396, %v394
        %v398 = vmul.f32 %v396, %v395
        %v399 = vadd.f32 %v388, %v397
        %v400 = vadd.f32 %v389, %v398
        %s401 = sld [smem:[#allocation8 + %s357]]
        %v402 = vstv %s401
        %v403 = vadd.f32 %v399, %v402
        %v404 = vadd.f32 %v400, %v402
        %v405 = vmul.f32 %v343, %v403
        %v406 = vmul.f32 %v348, %v404
        %v407 = vpack.c.bf16 %v405, %v405
        %v408 = vpack.c.bf16 %v406, %v406
        %411 = vrot.lane.b32.xlu0 %v407, 16
        %v412 = vpop.permute.xlu0 %411
        %413 = vrot.lane.b32.xlu0 %v408, 16
        %v414 = vpop.permute.xlu0 %413
        %vm417 = vcmask 257152
        %418 = vst.msk [vmem:[#allocation2] sm:$0xf] %vm417, %v412
        %419 = vst.msk [vmem:[#allocation2 + $0x4] sm:$0xf] %vm417, %v414
        %s420 = sadd.s32 %s289, 2
        %s421 = sld [smem:[#allocation7 + %s420]]
        %v422 = vld [vmem:[%s247] sm:$0xff]
        %v423 = vld [vmem:[%s247 + $0x8] sm:$0xff]
        %v424 = vstv %s421
        %v425 = vmul.f32 %v424, %v422
        %v426 = vmul.f32 %v424, %v423
        %s427 = sshra.s32 %s420, 7
        %s428 = sand.u32 %s420, 127
        %s429 = sadd.s32 %s427, 1
        %s430 = smul.u32 %s429, 128
        %s431 = sshra.s32 %s420, 7
        %s432 = sand.u32 %s420, 127
        %s433 = sadd.s32 %s430, %s432
        %s434 = sld [smem:[#allocation7 + %s433]]
        %v435 = vld [vmem:[%s304] sm:$0xff]
        %v436 = vld [vmem:[%s304 + $0x8] sm:$0xff]
        %v437 = vstv %s434
        %v438 = vmul.f32 %v437, %v435
        %v439 = vmul.f32 %v437, %v436
        %v440 = vadd.f32 %v425, %v438
        %v441 = vadd.f32 %v426, %v439
        %s442 = sadd.s32 %s427, 2
        %s443 = smul.u32 %s442, 128
        %s444 = sadd.s32 %s443, %s432
        %s445 = sld [smem:[#allocation7 + %s444]]
        %v446 = vld [vmem:[%s316] sm:$0xff]
        %v447 = vld [vmem:[%s316 + $0x8] sm:$0xff]
        %v448 = vstv %s445
        %v449 = vmul.f32 %v448, %v446
        %v450 = vmul.f32 %v448, %v447
        %v451 = vadd.f32 %v440, %v449
        %v452 = vadd.f32 %v441, %v450
        %s453 = sadd.s32 %s427, 3
        %s454 = smul.u32 %s453, 128
        %s455 = sadd.s32 %s454, %s432
        %s456 = sld [smem:[#allocation7 + %s455]]
        %v457 = vld [vmem:[%s328] sm:$0xff]
        %v458 = vld [vmem:[%s328 + $0x8] sm:$0xff]
        %v459 = vstv %s456
        %v460 = vmul.f32 %v459, %v457
        %v461 = vmul.f32 %v459, %v458
        %v462 = vadd.f32 %v451, %v460
        %v463 = vadd.f32 %v452, %v461
        %s464 = sld [smem:[#allocation8 + %s420]]
        %v465 = vstv %s464
        %v466 = vadd.f32 %v462, %v465
        %v467 = vadd.f32 %v463, %v465
        %v468 = vmul.f32 %v343, %v466
        %v469 = vmul.f32 %v348, %v467
        %v470 = vpack.c.bf16 %v468, %v468
        %v471 = vpack.c.bf16 %v469, %v469
        %474 = vrot.lane.b32.xlu0 %v470, 32
        %v475 = vpop.permute.xlu0 %474
        %476 = vrot.lane.b32.xlu0 %v471, 32
        %v477 = vpop.permute.xlu0 %476
        %vm480 = vcmask 388352
        %481 = vst.msk [vmem:[#allocation2] sm:$0xf] %vm480, %v475
        %482 = vst.msk [vmem:[#allocation2 + $0x4] sm:$0xf] %vm480, %v477
        %s483 = sadd.s32 %s289, 3
        %s484 = sld [smem:[#allocation7 + %s483]]
        %v485 = vld [vmem:[%s247] sm:$0xff]
        %v486 = vld [vmem:[%s247 + $0x8] sm:$0xff]
        %v487 = vstv %s484
        %v488 = vmul.f32 %v487, %v485
        %v489 = vmul.f32 %v487, %v486
        %s490 = sshra.s32 %s483, 7
        %s491 = sand.u32 %s483, 127
        %s492 = sadd.s32 %s490, 1
        %s493 = smul.u32 %s492, 128
        %s494 = sshra.s32 %s483, 7
        %s495 = sand.u32 %s483, 127
        %s496 = sadd.s32 %s493, %s495
        %s497 = sld [smem:[#allocation7 + %s496]]
        %v498 = vld [vmem:[%s304] sm:$0xff]
        %v499 = vld [vmem:[%s304 + $0x8] sm:$0xff]
        %v500 = vstv %s497
        %v501 = vmul.f32 %v500, %v498
        %v502 = vmul.f32 %v500, %v499
        %v503 = vadd.f32 %v488, %v501
        %v504 = vadd.f32 %v489, %v502
        %s505 = sadd.s32 %s490, 2
        %s506 = smul.u32 %s505, 128
        %s507 = sadd.s32 %s506, %s495
        %s508 = sld [smem:[#allocation7 + %s507]]
        %v509 = vld [vmem:[%s316] sm:$0xff]
        %v510 = vld [vmem:[%s316 + $0x8] sm:$0xff]
        %v511 = vstv %s508
        %v512 = vmul.f32 %v511, %v509
        %v513 = vmul.f32 %v511, %v510
        %v514 = vadd.f32 %v503, %v512
        %v515 = vadd.f32 %v504, %v513
        %s516 = sadd.s32 %s490, 3
        %s517 = smul.u32 %s516, 128
        %s518 = sadd.s32 %s517, %s495
        %s519 = sld [smem:[#allocation7 + %s518]]
        %v520 = vld [vmem:[%s328] sm:$0xff]
        %v521 = vld [vmem:[%s328 + $0x8] sm:$0xff]
        %v522 = vstv %s519
        %v523 = vmul.f32 %v522, %v520
        %v524 = vmul.f32 %v522, %v521
        %v525 = vadd.f32 %v514, %v523
        %v526 = vadd.f32 %v515, %v524
        %s527 = sld [smem:[#allocation8 + %s483]]
        %v528 = vstv %s527
        %v529 = vadd.f32 %v525, %v528
        %v530 = vadd.f32 %v526, %v528
        %v531 = vmul.f32 %v343, %v529
        %v532 = vmul.f32 %v348, %v530
        %v533 = vpack.c.bf16 %v531, %v531
        %v534 = vpack.c.bf16 %v532, %v532
        %537 = vrot.lane.b32.xlu0 %v533, 48
        %v538 = vpop.permute.xlu0 %537
        %539 = vrot.lane.b32.xlu0 %v534, 48
        %v540 = vpop.permute.xlu0 %539
        %vm543 = vcmask 519552
        %544 = vst.msk [vmem:[#allocation2] sm:$0xf] %vm543, %v538
        %545 = vst.msk [vmem:[#allocation2 + $0x4] sm:$0xf] %vm543, %v540
        %s546 = sadd.s32 %s289, 4
        %s547 = sld [smem:[#allocation7 + %s546]]
        %v548 = vld [vmem:[%s247] sm:$0xff]
        %v549 = vld [vmem:[%s247 + $0x8] sm:$0xff]
        %v550 = vstv %s547
        %v551 = vmul.f32 %v550, %v548
        %v552 = vmul.f32 %v550, %v549
        %s553 = sshra.s32 %s546, 7
        %s554 = sand.u32 %s546, 127
        %s555 = sadd.s32 %s553, 1
        %s556 = smul.u32 %s555, 128
        %s557 = sshra.s32 %s546, 7
        %s558 = sand.u32 %s546, 127
        %s559 = sadd.s32 %s556, %s558
        %s560 = sld [smem:[#allocation7 + %s559]]
        %v561 = vld [vmem:[%s304] sm:$0xff]
        %v562 = vld [vmem:[%s304 + $0x8] sm:$0xff]
        %v563 = vstv %s560
        %v564 = vmul.f32 %v563, %v561
        %v565 = vmul.f32 %v563, %v562
        %v566 = vadd.f32 %v551, %v564
        %v567 = vadd.f32 %v552, %v565
        %s568 = sadd.s32 %s553, 2
        %s569 = smul.u32 %s568, 128
        %s570 = sadd.s32 %s569, %s558
        %s571 = sld [smem:[#allocation7 + %s570]]
        %v572 = vld [vmem:[%s316] sm:$0xff]
        %v573 = vld [vmem:[%s316 + $0x8] sm:$0xff]
        %v574 = vstv %s571
        %v575 = vmul.f32 %v574, %v572
        %v576 = vmul.f32 %v574, %v573
        %v577 = vadd.f32 %v566, %v575
        %v578 = vadd.f32 %v567, %v576
        %s579 = sadd.s32 %s553, 3
        %s580 = smul.u32 %s579, 128
        %s581 = sadd.s32 %s580, %s558
        %s582 = sld [smem:[#allocation7 + %s581]]
        %v583 = vld [vmem:[%s328] sm:$0xff]
        %v584 = vld [vmem:[%s328 + $0x8] sm:$0xff]
        %v585 = vstv %s582
        %v586 = vmul.f32 %v585, %v583
        %v587 = vmul.f32 %v585, %v584
        %v588 = vadd.f32 %v577, %v586
        %v589 = vadd.f32 %v578, %v587
        %s590 = sld [smem:[#allocation8 + %s546]]
        %v591 = vstv %s590
        %v592 = vadd.f32 %v588, %v591
        %v593 = vadd.f32 %v589, %v591
        %v594 = vmul.f32 %v343, %v592
        %v595 = vmul.f32 %v348, %v593
        %v596 = vpack.c.bf16 %v594, %v594
        %v597 = vpack.c.bf16 %v595, %v595
        %600 = vrot.lane.b32.xlu0 %v596, 64
        %v601 = vpop.permute.xlu0 %600
        %602 = vrot.lane.b32.xlu0 %v597, 64
        %v603 = vpop.permute.xlu0 %602
        %vm606 = vcmask 650752
        %607 = vst.msk [vmem:[#allocation2] sm:$0xf] %vm606, %v601
        %608 = vst.msk [vmem:[#allocation2 + $0x4] sm:$0xf] %vm606, %v603
        %s609 = sadd.s32 %s289, 5
        %s610 = sld [smem:[#allocation7 + %s609]]
        %v611 = vld [vmem:[%s247] sm:$0xff]
        %v612 = vld [vmem:[%s247 + $0x8] sm:$0xff]
        %v613 = vstv %s610
        %v614 = vmul.f32 %v613, %v611
        %v615 = vmul.f32 %v613, %v612
        %s616 = sshra.s32 %s609, 7
        %s617 = sand.u32 %s609, 127
        %s618 = sadd.s32 %s616, 1
        %s619 = smul.u32 %s618, 128
        %s620 = sshra.s32 %s609, 7
        %s621 = sand.u32 %s609, 127
        %s622 = sadd.s32 %s619, %s621
        %s623 = sld [smem:[#allocation7 + %s622]]
        %v624 = vld [vmem:[%s304] sm:$0xff]
        %v625 = vld [vmem:[%s304 + $0x8] sm:$0xff]
        %v626 = vstv %s623
        %v627 = vmul.f32 %v626, %v624
        %v628 = vmul.f32 %v626, %v625
        %v629 = vadd.f32 %v614, %v627
        %v630 = vadd.f32 %v615, %v628
        %s631 = sadd.s32 %s616, 2
        %s632 = smul.u32 %s631, 128
        %s633 = sadd.s32 %s632, %s621
        %s634 = sld [smem:[#allocation7 + %s633]]
        %v635 = vld [vmem:[%s316] sm:$0xff]
        %v636 = vld [vmem:[%s316 + $0x8] sm:$0xff]
        %v637 = vstv %s634
        %v638 = vmul.f32 %v637, %v635
        %v639 = vmul.f32 %v637, %v636
        %v640 = vadd.f32 %v629, %v638
        %v641 = vadd.f32 %v630, %v639
        %s642 = sadd.s32 %s616, 3
        %s643 = smul.u32 %s642, 128
        %s644 = sadd.s32 %s643, %s621
        %s645 = sld [smem:[#allocation7 + %s644]]
        %v646 = vld [vmem:[%s328] sm:$0xff]
        %v647 = vld [vmem:[%s328 + $0x8] sm:$0xff]
        %v648 = vstv %s645
        %v649 = vmul.f32 %v648, %v646
        %v650 = vmul.f32 %v648, %v647
        %v651 = vadd.f32 %v640, %v649
        %v652 = vadd.f32 %v641, %v650
        %s653 = sld [smem:[#allocation8 + %s609]]
        %v654 = vstv %s653
        %v655 = vadd.f32 %v651, %v654
        %v656 = vadd.f32 %v652, %v654
        %v657 = vmul.f32 %v343, %v655
        %v658 = vmul.f32 %v348, %v656
        %v659 = vpack.c.bf16 %v657, %v657
        %v660 = vpack.c.bf16 %v658, %v658
        %663 = vrot.lane.b32.xlu0 %v659, 80
        %v664 = vpop.permute.xlu0 %663
        %665 = vrot.lane.b32.xlu0 %v660, 80
        %v666 = vpop.permute.xlu0 %665
        %vm669 = vcmask 781952
        %670 = vst.msk [vmem:[#allocation2] sm:$0xf] %vm669, %v664
        %671 = vst.msk [vmem:[#allocation2 + $0x4] sm:$0xf] %vm669, %v666
        %s672 = sadd.s32 %s289, 6
        %s673 = sld [smem:[#allocation7 + %s672]]
        %v674 = vld [vmem:[%s247] sm:$0xff]
        %v675 = vld [vmem:[%s247 + $0x8] sm:$0xff]
        %v676 = vstv %s673
        %v677 = vmul.f32 %v676, %v674
        %v678 = vmul.f32 %v676, %v675
        %s679 = sshra.s32 %s672, 7
        %s680 = sand.u32 %s672, 127
        %s681 = sadd.s32 %s679, 1
        %s682 = smul.u32 %s681, 128
        %s683 = sshra.s32 %s672, 7
        %s684 = sand.u32 %s672, 127
        %s685 = sadd.s32 %s682, %s684
        %s686 = sld [smem:[#allocation7 + %s685]]
        %v687 = vld [vmem:[%s304] sm:$0xff]
        %v688 = vld [vmem:[%s304 + $0x8] sm:$0xff]
        %v689 = vstv %s686
        %v690 = vmul.f32 %v689, %v687
        %v691 = vmul.f32 %v689, %v688
        %v692 = vadd.f32 %v677, %v690
        %v693 = vadd.f32 %v678, %v691
        %s694 = sadd.s32 %s679, 2
        %s695 = smul.u32 %s694, 128
        %s696 = sadd.s32 %s695, %s684
        %s697 = sld [smem:[#allocation7 + %s696]]
        %v698 = vld [vmem:[%s316] sm:$0xff]
        %v699 = vld [vmem:[%s316 + $0x8] sm:$0xff]
        %v700 = vstv %s697
        %v701 = vmul.f32 %v700, %v698
        %v702 = vmul.f32 %v700, %v699
        %v703 = vadd.f32 %v692, %v701
        %v704 = vadd.f32 %v693, %v702
        %s705 = sadd.s32 %s679, 3
        %s706 = smul.u32 %s705, 128
        %s707 = sadd.s32 %s706, %s684
        %s708 = sld [smem:[#allocation7 + %s707]]
        %v709 = vld [vmem:[%s328] sm:$0xff]
        %v710 = vld [vmem:[%s328 + $0x8] sm:$0xff]
        %v711 = vstv %s708
        %v712 = vmul.f32 %v711, %v709
        %v713 = vmul.f32 %v711, %v710
        %v714 = vadd.f32 %v703, %v712
        %v715 = vadd.f32 %v704, %v713
        %s716 = sld [smem:[#allocation8 + %s672]]
        %v717 = vstv %s716
        %v718 = vadd.f32 %v714, %v717
        %v719 = vadd.f32 %v715, %v717
        %v720 = vmul.f32 %v343, %v718
        %v721 = vmul.f32 %v348, %v719
        %v722 = vpack.c.bf16 %v720, %v720
        %v723 = vpack.c.bf16 %v721, %v721
        %726 = vrot.lane.b32.xlu0 %v722, 96
        %v727 = vpop.permute.xlu0 %726
        %728 = vrot.lane.b32.xlu0 %v723, 96
        %v729 = vpop.permute.xlu0 %728
        %vm732 = vcmask 913152
        %733 = vst.msk [vmem:[#allocation2] sm:$0xf] %vm732, %v727
        %734 = vst.msk [vmem:[#allocation2 + $0x4] sm:$0xf] %vm732, %v729
        %s735 = sadd.s32 %s289, 7
        %s736 = sld [smem:[#allocation7 + %s735]]
        %v737 = vld [vmem:[%s247] sm:$0xff]
        %v738 = vld [vmem:[%s247 + $0x8] sm:$0xff]
        %v739 = vstv %s736
        %v740 = vmul.f32 %v739, %v737
        %v741 = vmul.f32 %v739, %v738
        %s742 = sshra.s32 %s735, 7
        %s743 = sand.u32 %s735, 127
        %s744 = sadd.s32 %s742, 1
        %s745 = smul.u32 %s744, 128
        %s746 = sshra.s32 %s735, 7
        %s747 = sand.u32 %s735, 127
        %s748 = sadd.s32 %s745, %s747
        %s749 = sld [smem:[#allocation7 + %s748]]
        %v750 = vld [vmem:[%s304] sm:$0xff]
        %v751 = vld [vmem:[%s304 + $0x8] sm:$0xff]
        %v752 = vstv %s749
        %v753 = vmul.f32 %v752, %v750
        %v754 = vmul.f32 %v752, %v751
        %v755 = vadd.f32 %v740, %v753
        %v756 = vadd.f32 %v741, %v754
        %s757 = sadd.s32 %s742, 2
        %s758 = smul.u32 %s757, 128
        %s759 = sadd.s32 %s758, %s747
        %s760 = sld [smem:[#allocation7 + %s759]]
        %v761 = vld [vmem:[%s316] sm:$0xff]
        %v762 = vld [vmem:[%s316 + $0x8] sm:$0xff]
        %v763 = vstv %s760
        %v764 = vmul.f32 %v763, %v761
        %v765 = vmul.f32 %v763, %v762
        %v766 = vadd.f32 %v755, %v764
        %v767 = vadd.f32 %v756, %v765
        %s768 = sadd.s32 %s742, 3
        %s769 = smul.u32 %s768, 128
        %s770 = sadd.s32 %s769, %s747
        %s771 = sld [smem:[#allocation7 + %s770]]
        %v772 = vld [vmem:[%s328] sm:$0xff]
        %v773 = vld [vmem:[%s328 + $0x8] sm:$0xff]
        %v774 = vstv %s771
        %v775 = vmul.f32 %v774, %v772
        %v776 = vmul.f32 %v774, %v773
        %v777 = vadd.f32 %v766, %v775
        %v778 = vadd.f32 %v767, %v776
        %s779 = sld [smem:[#allocation8 + %s735]]
        %v780 = vstv %s779
        %v781 = vadd.f32 %v777, %v780
        %v782 = vadd.f32 %v778, %v780
        %v783 = vmul.f32 %v343, %v781
        %v784 = vmul.f32 %v348, %v782
        %v785 = vpack.c.bf16 %v783, %v783
        %v786 = vpack.c.bf16 %v784, %v784
        %789 = vrot.lane.b32.xlu0 %v785, 112
        %v790 = vpop.permute.xlu0 %789
        %791 = vrot.lane.b32.xlu0 %v786, 112
        %v792 = vpop.permute.xlu0 %791
        %vm795 = vcmask 1044352
        %796 = vst.msk [vmem:[#allocation2] sm:$0xf] %vm795, %v790
        %797 = vst.msk [vmem:[#allocation2 + $0x4] sm:$0xf] %vm795, %v792
        %v798 = vld [vmem:[#allocation2] sm:$0xf]
        %v799 = vld [vmem:[#allocation2 + $0x4] sm:$0xf]
        %v800 = vld [vmem:[%s1] sm:$0xf]
        %v801 = vld [vmem:[%s1 + $0x4] sm:$0xf]
        %v802 = vunpack.c.l.bf16 %v798
        %v803 = vunpack.c.l.bf16 %v799
        %v806 = vunpack.c.l.b16 %v800
        %v807 = vunpack.c.l.b16 %v801
        %v808 = vpack.c.b16 %v807, %v806
        %v811 = vunpack.c.l.b16 %v798
        %v812 = vunpack.c.l.b16 %v799
        %v813 = vpack.c.b16 %v812, %v811
        %vm815 = vcmask 130048
        %v817 = vsel %vm815, %v808, 0
        %819 = vmatpush.bf16.msra.mxu0 0
        %820 = vmatpush.bf16.msra.mxu0 0
        %821 = vmatpush.bf16.msra.mxu0 0
        %822 = vmatpush.bf16.msra.mxu0 0
        %823 = vmatpush.bf16.msra.mxu0 0
        %824 = vmatpush.bf16.msra.mxu0 0
        %825 = vmatpush.bf16.msra.mxu0 0
        %826 = vmatpush.bf16.msra.mxu0 %v813
        %827 = vmatmul.bf16.gmra.mxu0 %v817
        %v828 = vpop.f32.mrf.mxu0
        %v829 = vadd.f32 %v802, %v828
        %v830 = vpop.f32.mrf.mxu0
        %v831 = vadd.f32 %v803, %v830
        %832 = vdwg.mxu0
        %v833 = vmul.f32 %v343, %v829
        %v834 = vmul.f32 %v348, %v831
        %vm835 = vcmp.ge.f32.partialorder %v833, 0.0
        %vm836 = vcmp.ge.f32.partialorder %v834, 0.0
        %v837 = vmul.f32 %v833, 0.01
        %v838 = vmul.f32 %v834, 0.01
        %v839 = vsel %vm835, %v833, %v837
        %v840 = vsel %vm836, %v834, %v838
        %841 = vst [vmem:[%s285] sm:$0xff] %v839
        %842 = vst [vmem:[%s285 + $0x8] sm:$0xff] %v840
        %s843 = sand.u32 %s156, 1
        %s844 = scalar_lea.sflag [#allocation5], %s843
        %s845 = sand.u32 %s156, 1
        %s846 = smul.addr %s845, 16
        %s847 = scalar_lea.vmem [#allocation10], %s846
        // Predicated region
        $region53: #{tpu_custom_call.1} parent=39 // pred_check
          %p848 = pneg %p166
        $region54: #{tpu_custom_call.1} parent=39 // pred_check_branch
          %850 = sbr.rel (%p848) target = $region56
        $region55: #{tpu_custom_call.1} parent=39 // pred_region
          %852 = vsyncadd %s844, 0
          %s853 = smul.addr %s28, 2
          %s854 = sadd.s32 %s29, %s853
          %s855 = smul.addr %s854, 8
          %s856 = scalar_lea.hbm %s5, %s855
          %s857 = sshll.u32 %s847, 4
          %s858 = int_to_ptr.vmem [resolvable:$true] %s857
          %s859 = sshll.u32 %s856, 4
          %s860 = int_to_ptr.hbm [resolvable:$true] %s859
          %865 = dma.vmem_to_hbm [thread:$0]  %s858, 256, %s860, %s844, 128, 128, 8
        $region56: #{tpu_custom_call.1} parent=39 // pred_fallthru
          _
      $region40: #{tpu_custom_call.1} parent=5 // pred_fallthru
        _
      %p866 = scmp.le.s32.totalorder 2, %s19
      // Predicated region
      $region57: #{tpu_custom_call.1} parent=5 // pred_check
        %p867 = pneg %p866
      $region58: #{tpu_custom_call.1} parent=5 // pred_check_branch
        %869 = sbr.rel (%p867) target = $region60
      $region59: #{tpu_custom_call.1} parent=5 // pred_region
        %s870 = ssub.s32 %s19, 2
        // Predicated region
        $region61: #{tpu_custom_call.1} parent=59 // pred_check
          %p871 = pneg %p172
        $region62: #{tpu_custom_call.1} parent=59 // pred_check_branch
          %873 = sbr.rel (%p871) target = $region64
        $region63: #{tpu_custom_call.1} parent=59 // pred_region
          %s874 = sand.u32 %s157, 1
          %s875 = scalar_lea.sflag [#allocation5], %s874
          %s876 = sand.u32 %s157, 1
          %s877 = smul.addr %s876, 16
          %s878 = scalar_lea.vmem [#allocation10], %s877
          %880 = dma.done %s875, 256
        $region64: #{tpu_custom_call.1} parent=59 // pred_fallthru
          _
      $region60: #{tpu_custom_call.1} parent=5 // pred_fallthru
        _
    $region6: #{tpu_custom_call.1} parent=1 // loop_footer
      %s23 = sadd.s32 1, %s19
    $region7: #{tpu_custom_call.1} parent=1 // loop_footer_branch
      %18 = sbr.rel target = $region3
    $region8: #{tpu_custom_call.1} parent=1 // loop_exit
      _
    %881 = vsyncpa [#allocation4], 1
    %s882 = scalar_lea.sflag [#allocation4], 1
    %883 = vsyncpa %s882, 1
    %884 = vsyncpa [#allocation5], 1
    %s885 = scalar_lea.sflag [#allocation5], 1
    %886 = vsyncpa %s885, 1
    %887 = vsyncpa [#allocation6], 1
    %s888 = scalar_lea.sflag [#allocation6], 1
    %889 = vsyncpa %s888, 1
    %890 = vsyncpa [#allocation9], 1

</llo_original>
